<compile_context>
chip_gen: v5e
topology: v5e:2x2
jax: 0.10.0
libtpu: 0.0.40
codegen_flags: <defaults>
</compile_context>

<pallas_src>
import jax
import jax.numpy as jnp
from jax.experimental import pallas as pl
from jax.experimental.pallas import tpu as pltpu

HIDDEN_1 = 400
HIDDEN_2 = 200
OUTPUT_SIZE = 1

# Lane/sublane-aligned (padded) layer widths.
H1_PAD = 512   # 400 -> 512 (4 * 128)
H2_PAD = 256   # 200 -> 256 (2 * 128)


def _round_up(n, m):
    return ((n + m - 1) // m) * m


def _pad2(a, rows, cols):
    return jnp.pad(a, ((0, rows - a.shape[0]), (0, cols - a.shape[1])))


def _critic_kernel(xT_ref, w1t_ref, b1t_ref, w2t_ref, b2t_ref, w3t_ref, b3_ref,
                   o_ref):
    # Layer 1: (H1_PAD, K) @ (K, tb) -> (H1_PAD, tb); f32 accumulation on MXU.
    h1 = jnp.dot(w1t_ref[...], xT_ref[...],
                 preferred_element_type=jnp.float32)
    h1 = jnp.maximum(h1 + b1t_ref[...], 0.0)            # bias column + ReLU (f32 VPU)

    # Layer 2: (H2_PAD, H1_PAD) @ (H1_PAD, tb) -> (H2_PAD, tb).
    # Cast activations to the weight dtype so the bf16 path feeds the MXU
    # natively; no-op for f32 weights.  Accumulation stays f32.
    h2 = jnp.dot(w2t_ref[...], h1.astype(w2t_ref.dtype),
                 preferred_element_type=jnp.float32)
    h2 = jnp.maximum(h2 + b2t_ref[...], 0.0)

    # Output head (N=1): elementwise scale + sublane reduction on VPU/XLU
    # (no wasted 1-wide MXU pass).  Result (1, tb) is lane-dense, so the
    # stores and the writeback DMA are unmasked and contiguous.
    o_ref[...] = (jnp.sum(h2 * w3t_ref[...], axis=0, keepdims=True)
                  + b3_ref[0, 0])


def prepare_params(w1, b1, w2, b2, w3, b3, *, compute_dtype=jnp.bfloat16):
    """One-time host-side prep: transpose, zero-pad to lane multiples, cast.

    Zero padding is an exact no-op through the ReLU layers and the head
    (padded weight rows/cols and biases are zero).  Call once per PPO update
    and reuse so the pad/cast ops stay off the per-forward hot path.
    """
    in_size = w1.shape[0]
    assert w1.shape == (in_size, HIDDEN_1)
    w1t = _pad2(w1.T, H1_PAD, in_size).astype(compute_dtype)         # (512, K)
    b1t = _pad2(b1.reshape(-1, 1), H1_PAD, 1).astype(jnp.float32)    # (512, 1)
    w2t = _pad2(w2.T, H2_PAD, H1_PAD).astype(compute_dtype)          # (256, 512)
    b2t = _pad2(b2.reshape(-1, 1), H2_PAD, 1).astype(jnp.float32)    # (256, 1)
    w3t = _pad2(w3, H2_PAD, 1).astype(jnp.float32)                   # (256, 1)
    b3s = jnp.asarray(b3, jnp.float32).reshape(1, 1)                 # SMEM scalar
    # TODO(synk): optional v7x-only fp8 quantization of w2t (dominant matmul).
    return (w1t, b1t, w2t, b2t, w3t, b3s)


def critic_forward_prepared(x, prepared, *, tb=2048):
    """Pallas forward pass with pre-prepared (padded/transposed) params.

    x: (B, input_size) float32 -> returns (B, 1) float32.
    tb: max batch tile (multiple of 128).  Capped so the grid has >= 2 steps
        when possible (lets v7x shard tiles across its 2 TensorCores).
    """
    w1t, b1t, w2t, b2t, w3t, b3s = prepared
    B, in_size = x.shape
    assert w1t.shape == (H1_PAD, in_size)

    # Pad batch only to the lane multiple (128), not to the tile size.
    B_pad = _round_up(B, 128)
    tb_eff = min(tb, B_pad)
    if B_pad >= 2 * 128:
        # Keep >= 2 grid steps (megacore on v7x); no-op when tb already small.
        tb_eff = min(tb_eff, _round_up(B_pad // 2, 128))
    grid = (pl.cdiv(B_pad, tb_eff),)

    # Batch on lanes: zero-pad the batch dim and transpose to (K, B_pad).
    # (pad + transpose + cast fuse into one small XLA copy; x is only
    #  4*K bytes/row so this is negligible next to the matmuls.)
    xT = jnp.pad(x.astype(jnp.float32),
                 ((0, B_pad - B), (0, 0))).T.astype(w1t.dtype)

    out = pl.pallas_call(
        _critic_kernel,
        out_shape=jax.ShapeDtypeStruct((1, B_pad), jnp.float32),
        grid=grid,
        in_specs=[
            # x^T tile streams per grid step (K is the full array dim -> legal
            # even though it isn't a multiple of 128; slab is contiguous).
            # TODO(synk): on v5e, if xprof shows the x DMA exposed, add
            # pipeline_mode=pl.Buffered(3) here.
            pl.BlockSpec((in_size, tb_eff), lambda i: (0, i)),
            # Weights/biases: constant index_map -> DMA'd once, VMEM-resident.
            pl.BlockSpec((H1_PAD, in_size), lambda i: (0, 0)),
            pl.BlockSpec((H1_PAD, 1),       lambda i: (0, 0)),
            pl.BlockSpec((H2_PAD, H1_PAD),  lambda i: (0, 0)),
            pl.BlockSpec((H2_PAD, 1),       lambda i: (0, 0)),
            pl.BlockSpec((H2_PAD, 1),       lambda i: (0, 0)),
            # Scalar output bias lives in SMEM.
            pl.BlockSpec((1, 1), lambda i: (0, 0),
                         memory_space=pltpu.MemorySpace.SMEM),
        ],
        # Lane-dense output: (1, tb) block of a (1, B_pad) row.
        out_specs=pl.BlockSpec((1, tb_eff), lambda i: (0, i)),
        compiler_params=pltpu.CompilerParams(
            dimension_semantics=("parallel",)),   # lets v7x use both TCs
    )(xT, w1t, b1t, w2t, b2t, w3t, b3s)

    return out.reshape(B_pad, 1)[:B]


def critic_forward(x, w1, b1, w2, b2, w3, b3, *, tb=2048,
                   compute_dtype=jnp.bfloat16):
    """Convenience wrapper (prepares params on the fly; prefer prepare_params
    + critic_forward_prepared in a training loop)."""
    prepared = prepare_params(w1, b1, w2, b2, w3, b3,
                              compute_dtype=compute_dtype)
    return critic_forward_prepared(x, prepared, tb=tb)


def init_params(key, input_size):
    """Deterministic parameter init (PyTorch-style uniform fan-in bounds)."""
    ks = jax.random.split(key, 6)

    def linear_params(kw, kb, fan_in, fan_out):
        bound = 1.0 / jnp.sqrt(jnp.float32(fan_in))
        # stored as (in, out), matching torch's y = x @ W^T convention flipped
        w = jax.random.uniform(kw, (fan_in, fan_out), jnp.float32, -bound, bound)
        b = jax.random.uniform(kb, (1, fan_out), jnp.float32, -bound, bound)
        return w, b

    w1, b1 = linear_params(ks[0], ks[1], input_size, HIDDEN_1)
    w2, b2 = linear_params(ks[2], ks[3], HIDDEN_1, HIDDEN_2)
    w3, b3 = linear_params(ks[4], ks[5], HIDDEN_2, OUTPUT_SIZE)
    return w1, b1, w2, b2, w3, b3


if __name__ == "__main__":
    key = jax.random.PRNGKey(0)
    k_params, k_x = jax.random.split(key)

    input_size = 8   # state dim (forward docstring: "Input: state (dim=8)")
    batch = 8

    params = init_params(k_params, input_size)
    x = jax.random.normal(k_x, (batch, input_size), jnp.float32)

    # Plain-JAX reference (forced-f32 matmuls).
    w1, b1, w2, b2, w3, b3 = params
    hp = jax.lax.Precision.HIGHEST
    ref = jnp.maximum(jnp.dot(x, w1, precision=hp) + b1, 0.0)
    ref = jnp.maximum(jnp.dot(ref, w2, precision=hp) + b2, 0.0)
    ref = jnp.dot(ref, w3, precision=hp) + b3

    # Exact f32 path.
    prepared_f32 = prepare_params(*params, compute_dtype=jnp.float32)
    out_f32 = jax.block_until_ready(critic_forward_prepared(x, prepared_f32))
    assert out_f32.shape == (batch, 1)
    assert jnp.allclose(out_f32, ref, atol=1e-4, rtol=1e-4)

    # Default fast path (bf16 weights/x on the MXU, f32 accumulation).
    prepared_bf16 = prepare_params(*params)   # bf16 by default
    out_bf16 = jax.block_until_ready(critic_forward_prepared(x, prepared_bf16))
    assert out_bf16.shape == (batch, 1)
    assert jnp.allclose(out_bf16, ref, atol=5e-2, rtol=5e-2)

    print("KERNEL_OK")
</pallas_src>

<mosaic_0001>
module attributes {stable_mosaic.version = 11 : i64} {
  func.func @_critic_kernel(%arg0: i32, %arg1: memref<8x128xf32, #tpu.memory_space<vmem>>, %arg2: memref<512x8xf32, #tpu.memory_space<vmem>>, %arg3: memref<512x1xf32, #tpu.memory_space<vmem>>, %arg4: memref<256x512xf32, #tpu.memory_space<vmem>>, %arg5: memref<256x1xf32, #tpu.memory_space<vmem>>, %arg6: memref<256x1xf32, #tpu.memory_space<vmem>>, %arg7: memref<1x1xf32, #tpu.memory_space<smem>>, %arg8: memref<1x128xf32, #tpu.memory_space<vmem>>) attributes {dimension_semantics = [#tpu.dimension_semantics<parallel>], iteration_bounds = array<i64: 1>, scalar_prefetch = 0 : i64, scratch_operands = 0 : i64, tpu.core_type = #tpu.core_type<tc>, window_params = [{transform_indices = @transform_0, window_bounds = array<i64: 8, 128>}, {pipeline_mode = #tpu.pipeline_mode<synchronous>, transform_indices = @transform_1, window_bounds = array<i64: 512, 8>}, {pipeline_mode = #tpu.pipeline_mode<synchronous>, transform_indices = @transform_2, window_bounds = array<i64: 512, 1>}, {pipeline_mode = #tpu.pipeline_mode<synchronous>, transform_indices = @transform_3, window_bounds = array<i64: 256, 512>}, {pipeline_mode = #tpu.pipeline_mode<synchronous>, transform_indices = @transform_4, window_bounds = array<i64: 256, 1>}, {pipeline_mode = #tpu.pipeline_mode<synchronous>, transform_indices = @transform_5, window_bounds = array<i64: 256, 1>}, {transform_indices = @transform_6, window_bounds = array<i64: 1, 1>}, {transform_indices = @transform_7, window_bounds = array<i64: 1, 128>}]} {
    %c0 = arith.constant 0 : index
    %c0_0 = arith.constant 0 : index
    %0 = vector.load %arg2[%c0, %c0_0] : memref<512x8xf32, #tpu.memory_space<vmem>>, vector<512x8xf32>
    %c0_1 = arith.constant 0 : index
    %c0_2 = arith.constant 0 : index
    %1 = vector.load %arg1[%c0_1, %c0_2] : memref<8x128xf32, #tpu.memory_space<vmem>>, vector<8x128xf32>
    %cst = arith.constant dense<0.000000e+00> : vector<512x128xf32>
    %2 = tpu.matmul %0, %1, %cst {dimension_numbers = #tpu.dot_dimension_numbers<[1], [0], [0], [1], [0, 0, 1, 1], [], []>} : vector<512x8xf32>, vector<8x128xf32>, vector<512x128xf32> -> vector<512x128xf32>
    %c0_3 = arith.constant 0 : index
    %c0_4 = arith.constant 0 : index
    %3 = vector.load %arg3[%c0_3, %c0_4] : memref<512x1xf32, #tpu.memory_space<vmem>>, vector<512x1xf32>
    %4 = vector.broadcast %3 : vector<512x1xf32> to vector<512x128xf32>
    %5 = arith.addf %2, %4 : vector<512x128xf32>
    %cst_5 = arith.constant 0.000000e+00 : f32
    %6 = vector.broadcast %cst_5 : f32 to vector<512x128xf32>
    %7 = arith.maximumf %5, %6 : vector<512x128xf32>
    %c0_6 = arith.constant 0 : index
    %c0_7 = arith.constant 0 : index
    %8 = vector.load %arg4[%c0_6, %c0_7] : memref<256x512xf32, #tpu.memory_space<vmem>>, vector<256x512xf32>
    %cst_8 = arith.constant dense<0.000000e+00> : vector<256x128xf32>
    %9 = tpu.matmul %8, %7, %cst_8 {dimension_numbers = #tpu.dot_dimension_numbers<[1], [0], [0], [1], [0, 0, 1, 1], [], []>} : vector<256x512xf32>, vector<512x128xf32>, vector<256x128xf32> -> vector<256x128xf32>
    %c0_9 = arith.constant 0 : index
    %c0_10 = arith.constant 0 : index
    %10 = vector.load %arg5[%c0_9, %c0_10] : memref<256x1xf32, #tpu.memory_space<vmem>>, vector<256x1xf32>
    %11 = vector.broadcast %10 : vector<256x1xf32> to vector<256x128xf32>
    %12 = arith.addf %9, %11 : vector<256x128xf32>
    %cst_11 = arith.constant 0.000000e+00 : f32
    %13 = vector.broadcast %cst_11 : f32 to vector<256x128xf32>
    %14 = arith.maximumf %12, %13 : vector<256x128xf32>
    %c0_12 = arith.constant 0 : index
    %c0_13 = arith.constant 0 : index
    %15 = vector.load %arg6[%c0_12, %c0_13] : memref<256x1xf32, #tpu.memory_space<vmem>>, vector<256x1xf32>
    %16 = vector.broadcast %15 : vector<256x1xf32> to vector<256x128xf32>
    %17 = arith.mulf %14, %16 : vector<256x128xf32>
    %cst_14 = arith.constant dense<0.000000e+00> : vector<128xf32>
    %18 = vector.multi_reduction <add>, %17, %cst_14 [0] : vector<256x128xf32> to vector<128xf32>
    %19 = vector.shape_cast %18 : vector<128xf32> to vector<1x128xf32>
    %c0_15 = arith.constant 0 : index
    %c0_16 = arith.constant 0 : index
    %20 = memref.load %arg7[%c0_15, %c0_16] : memref<1x1xf32, #tpu.memory_space<smem>>
    %21 = vector.broadcast %20 : f32 to vector<1x128xf32>
    %22 = arith.addf %19, %21 : vector<1x128xf32>
    %c0_17 = arith.constant 0 : index
    %c0_18 = arith.constant 0 : index
    %23 = vector.load %arg8[%c0_17, %c0_18] : memref<1x128xf32, #tpu.memory_space<vmem>>, vector<1x128xf32>
    tpu.vector_store %arg8[%c0_17, %c0_18], %22 {strides = array<i32>} : memref<1x128xf32, #tpu.memory_space<vmem>>, vector<1x128xf32>,
    return
  }
  func.func @transform_0(%arg0: i32) -> (i32, i32) {
    %c0_i32 = arith.constant 0 : i32
    %c0_i32_0 = arith.constant 0 : i32
    return %c0_i32, %arg0 : i32, i32
  }
  func.func @transform_1(%arg0: i32) -> (i32, i32) {
    %c0_i32 = arith.constant 0 : i32
    %c0_i32_0 = arith.constant 0 : i32
    %c0_i32_1 = arith.constant 0 : i32
    return %c0_i32, %c0_i32_0 : i32, i32
  }
  func.func @transform_2(%arg0: i32) -> (i32, i32) {
    %c0_i32 = arith.constant 0 : i32
    %c0_i32_0 = arith.constant 0 : i32
    %c0_i32_1 = arith.constant 0 : i32
    return %c0_i32, %c0_i32_0 : i32, i32
  }
  func.func @transform_3(%arg0: i32) -> (i32, i32) {
    %c0_i32 = arith.constant 0 : i32
    %c0_i32_0 = arith.constant 0 : i32
    %c0_i32_1 = arith.constant 0 : i32
    return %c0_i32, %c0_i32_0 : i32, i32
  }
  func.func @transform_4(%arg0: i32) -> (i32, i32) {
    %c0_i32 = arith.constant 0 : i32
    %c0_i32_0 = arith.constant 0 : i32
    %c0_i32_1 = arith.constant 0 : i32
    return %c0_i32, %c0_i32_0 : i32, i32
  }
  func.func @transform_5(%arg0: i32) -> (i32, i32) {
    %c0_i32 = arith.constant 0 : i32
    %c0_i32_0 = arith.constant 0 : i32
    %c0_i32_1 = arith.constant 0 : i32
    return %c0_i32, %c0_i32_0 : i32, i32
  }
  func.func @transform_6(%arg0: i32) -> (i32, i32) {
    %c0_i32 = arith.constant 0 : i32
    %c0_i32_0 = arith.constant 0 : i32
    %c0_i32_1 = arith.constant 0 : i32
    return %c0_i32, %c0_i32_0 : i32, i32
  }
  func.func @transform_7(%arg0: i32) -> (i32, i32) {
    %c0_i32 = arith.constant 0 : i32
    %c0_i32_0 = arith.constant 0 : i32
    return %c0_i32, %arg0 : i32, i32
  }
}

</mosaic_0001>

<llo_original>
// kernel: tpu_custom_call.1
$region0: #{tpu_custom_call.1}
  #allocation0 [shape = 'u32[]', space=smem, size = 0x4, offset = 0x4, fixed_abs, tag = 'smem constant byte address 0x4 - core index']
  #allocation1 [shape = 'u32[72,128]{1,0:T(1,128)}', space=vmem, size = 0x9000, scoped, tag = 'internal scratch']
  #allocation2 [shape = 'f32[1,1]{1,0:T(1,128)S(6)}', space=smem, size = 0x200, scoped, tag = 'scoped memory for tpu_custom_call.1']
  %s0 = inlined_call_operand.vmem [shape: f32[8,128], index: 0, kind: input, shape index: {}]
  %s1 = inlined_call_operand.vmem [shape: f32[512,8], index: 1, kind: input, shape index: {}]
  %s2 = inlined_call_operand.vmem [shape: f32[512,1], index: 2, kind: input, shape index: {}]
  %s3 = inlined_call_operand.vmem [shape: f32[256,512], index: 3, kind: input, shape index: {}]
  %s4 = inlined_call_operand.vmem [shape: f32[256,1], index: 4, kind: input, shape index: {}]
  %s5 = inlined_call_operand.vmem [shape: f32[256,1], index: 5, kind: input, shape index: {}]
  %s6 = inlined_call_operand.<no memory space> [shape: f32[1,1], index: 6, kind: input, shape index: {}]
  %s7 = inlined_call_operand.hbm [shape: f32[1,128], index: 7, kind: output, shape index: {}]
  %s8 = sld [smem:[#allocation0]]
  $region38: #{tpu_custom_call.1} parent=0
    _
  %s10 = ssub.s32 1, %s8
  %s11 = scalar_select 0, %s10, %s8
  %12 = sst [smem:[#allocation2]] %s6
  $region1: #{tpu_custom_call.1} parent=0
    #allocation3 [shape = 'u8[512]{0}', space=vmem, size = 0x400, scoped, tag = 'output window, operand 0, single buffered']
    #allocation4 [shape = 's32[1]{0}', space=sflag, size = 0x4, scoped, tag = 'scoped memory for tpu_custom_call.1']
    %13 = vsyncpa [#allocation4], 0
    // Predicated region
    $region2: #{tpu_custom_call.1} parent=1 // pred_check
      _
    $region3: #{tpu_custom_call.1} parent=1 // pred_check_branch
      %15 = sbr.rel (0) target = $region5
    $region4: #{tpu_custom_call.1} parent=1 // pred_region
      _
    $region5: #{tpu_custom_call.1} parent=1 // pred_fallthru
      _
    // Predicated region
    $region6: #{tpu_custom_call.1} parent=1 // pred_check
      _
    $region7: #{tpu_custom_call.1} parent=1 // pred_check_branch
      %17 = sbr.rel (0) target = $region9
    $region8: #{tpu_custom_call.1} parent=1 // pred_region
      _
    $region9: #{tpu_custom_call.1} parent=1 // pred_fallthru
      _
    // Predicated region
    $region10: #{tpu_custom_call.1} parent=1 // pred_check
      _
    $region11: #{tpu_custom_call.1} parent=1 // pred_check_branch
      %19 = sbr.rel (0) target = $region13
    $region12: #{tpu_custom_call.1} parent=1 // pred_region
      _
    $region13: #{tpu_custom_call.1} parent=1 // pred_fallthru
      _
    // Predicated region
    $region14: #{tpu_custom_call.1} parent=1 // pred_check
      _
    $region15: #{tpu_custom_call.1} parent=1 // pred_check_branch
      %21 = sbr.rel (0) target = $region17
    $region16: #{tpu_custom_call.1} parent=1 // pred_region
      _
    $region17: #{tpu_custom_call.1} parent=1 // pred_fallthru
      _
    // Predicated region
    $region18: #{tpu_custom_call.1} parent=1 // pred_check
      _
    $region19: #{tpu_custom_call.1} parent=1 // pred_check_branch
      %23 = sbr.rel (0) target = $region21
    $region20: #{tpu_custom_call.1} parent=1 // pred_region
      _
    $region21: #{tpu_custom_call.1} parent=1 // pred_fallthru
      _
    // Predicated region
    $region22: #{tpu_custom_call.1} parent=1 // pred_check
      _
    $region23: #{tpu_custom_call.1} parent=1 // pred_check_branch
      %25 = sbr.rel (0) target = $region25
    $region24: #{tpu_custom_call.1} parent=1 // pred_region
      _
    $region25: #{tpu_custom_call.1} parent=1 // pred_fallthru
      _
    // Predicated region
    $region26: #{tpu_custom_call.1} parent=1 // pred_check
      _
    $region27: #{tpu_custom_call.1} parent=1 // pred_check_branch
      %27 = sbr.rel (0) target = $region29
    $region28: #{tpu_custom_call.1} parent=1 // pred_region
      _
    $region29: #{tpu_custom_call.1} parent=1 // pred_fallthru
      _
    %v28 = vld [vmem:[%s1] sm:$0xff]
    %v29 = vld [vmem:[%s1 + $0x8] sm:$0xff]
    %v30 = vld [vmem:[%s1 + $0x10] sm:$0xff]
    %v31 = vld [vmem:[%s1 + $0x18] sm:$0xff]
    %v32 = vld [vmem:[%s1 + $0x20] sm:$0xff]
    %v33 = vld [vmem:[%s1 + $0x28] sm:$0xff]
    %v34 = vld [vmem:[%s1 + $0x30] sm:$0xff]
    %v35 = vld [vmem:[%s1 + $0x38] sm:$0xff]
    %v36 = vld [vmem:[%s1 + $0x40] sm:$0xff]
    %v37 = vld [vmem:[%s1 + $0x48] sm:$0xff]
    %v38 = vld [vmem:[%s1 + $0x50] sm:$0xff]
    %v39 = vld [vmem:[%s1 + $0x58] sm:$0xff]
    %v40 = vld [vmem:[%s1 + $0x60] sm:$0xff]
    %v41 = vld [vmem:[%s1 + $0x68] sm:$0xff]
    %v42 = vld [vmem:[%s1 + $0x70] sm:$0xff]
    %v43 = vld [vmem:[%s1 + $0x78] sm:$0xff]
    %v44 = vld [vmem:[%s1 + $0x80] sm:$0xff]
    %v45 = vld [vmem:[%s1 + $0x88] sm:$0xff]
    %v46 = vld [vmem:[%s1 + $0x90] sm:$0xff]
    %v47 = vld [vmem:[%s1 + $0x98] sm:$0xff]
    %v48 = vld [vmem:[%s1 + $0xa0] sm:$0xff]
    %v49 = vld [vmem:[%s1 + $0xa8] sm:$0xff]
    %v50 = vld [vmem:[%s1 + $0xb0] sm:$0xff]
    %v51 = vld [vmem:[%s1 + $0xb8] sm:$0xff]
    %v52 = vld [vmem:[%s1 + $0xc0] sm:$0xff]
    %v53 = vld [vmem:[%s1 + $0xc8] sm:$0xff]
    %v54 = vld [vmem:[%s1 + $0xd0] sm:$0xff]
    %v55 = vld [vmem:[%s1 + $0xd8] sm:$0xff]
    %v56 = vld [vmem:[%s1 + $0xe0] sm:$0xff]
    %v57 = vld [vmem:[%s1 + $0xe8] sm:$0xff]
    %v58 = vld [vmem:[%s1 + $0xf0] sm:$0xff]
    %v59 = vld [vmem:[%s1 + $0xf8] sm:$0xff]
    %v60 = vld [vmem:[%s1 + $0x100] sm:$0xff]
    %v61 = vld [vmem:[%s1 + $0x108] sm:$0xff]
    %v62 = vld [vmem:[%s1 + $0x110] sm:$0xff]
    %v63 = vld [vmem:[%s1 + $0x118] sm:$0xff]
    %v64 = vld [vmem:[%s1 + $0x120] sm:$0xff]
    %v65 = vld [vmem:[%s1 + $0x128] sm:$0xff]
    %v66 = vld [vmem:[%s1 + $0x130] sm:$0xff]
    %v67 = vld [vmem:[%s1 + $0x138] sm:$0xff]
    %v68 = vld [vmem:[%s1 + $0x140] sm:$0xff]
    %v69 = vld [vmem:[%s1 + $0x148] sm:$0xff]
    %v70 = vld [vmem:[%s1 + $0x150] sm:$0xff]
    %v71 = vld [vmem:[%s1 + $0x158] sm:$0xff]
    %v72 = vld [vmem:[%s1 + $0x160] sm:$0xff]
    %v73 = vld [vmem:[%s1 + $0x168] sm:$0xff]
    %v74 = vld [vmem:[%s1 + $0x170] sm:$0xff]
    %v75 = vld [vmem:[%s1 + $0x178] sm:$0xff]
    %v76 = vld [vmem:[%s1 + $0x180] sm:$0xff]
    %v77 = vld [vmem:[%s1 + $0x188] sm:$0xff]
    %v78 = vld [vmem:[%s1 + $0x190] sm:$0xff]
    %v79 = vld [vmem:[%s1 + $0x198] sm:$0xff]
    %v80 = vld [vmem:[%s1 + $0x1a0] sm:$0xff]
    %v81 = vld [vmem:[%s1 + $0x1a8] sm:$0xff]
    %v82 = vld [vmem:[%s1 + $0x1b0] sm:$0xff]
    %v83 = vld [vmem:[%s1 + $0x1b8] sm:$0xff]
    %v84 = vld [vmem:[%s1 + $0x1c0] sm:$0xff]
    %v85 = vld [vmem:[%s1 + $0x1c8] sm:$0xff]
    %v86 = vld [vmem:[%s1 + $0x1d0] sm:$0xff]
    %v87 = vld [vmem:[%s1 + $0x1d8] sm:$0xff]
    %v88 = vld [vmem:[%s1 + $0x1e0] sm:$0xff]
    %v89 = vld [vmem:[%s1 + $0x1e8] sm:$0xff]
    %v90 = vld [vmem:[%s1 + $0x1f0] sm:$0xff]
    %v91 = vld [vmem:[%s1 + $0x1f8] sm:$0xff]
    %v92 = vld [vmem:[%s0] sm:$0xff]
    %v93 = vld [vmem:[%s2] sm:$0xff]
    %v94 = vld [vmem:[%s2 + $0x8] sm:$0xff]
    %v95 = vld [vmem:[%s2 + $0x10] sm:$0xff]
    %v96 = vld [vmem:[%s2 + $0x18] sm:$0xff]
    %v97 = vld [vmem:[%s2 + $0x20] sm:$0xff]
    %v98 = vld [vmem:[%s2 + $0x28] sm:$0xff]
    %v99 = vld [vmem:[%s2 + $0x30] sm:$0xff]
    %v100 = vld [vmem:[%s2 + $0x38] sm:$0xff]
    %v101 = vld [vmem:[%s2 + $0x40] sm:$0xff]
    %v102 = vld [vmem:[%s2 + $0x48] sm:$0xff]
    %v103 = vld [vmem:[%s2 + $0x50] sm:$0xff]
    %v104 = vld [vmem:[%s2 + $0x58] sm:$0xff]
    %v105 = vld [vmem:[%s2 + $0x60] sm:$0xff]
    %v106 = vld [vmem:[%s2 + $0x68] sm:$0xff]
    %v107 = vld [vmem:[%s2 + $0x70] sm:$0xff]
    %v108 = vld [vmem:[%s2 + $0x78] sm:$0xff]
    %v109 = vld [vmem:[%s2 + $0x80] sm:$0xff]
    %v110 = vld [vmem:[%s2 + $0x88] sm:$0xff]
    %v111 = vld [vmem:[%s2 + $0x90] sm:$0xff]
    %v112 = vld [vmem:[%s2 + $0x98] sm:$0xff]
    %v113 = vld [vmem:[%s2 + $0xa0] sm:$0xff]
    %v114 = vld [vmem:[%s2 + $0xa8] sm:$0xff]
    %v115 = vld [vmem:[%s2 + $0xb0] sm:$0xff]
    %v116 = vld [vmem:[%s2 + $0xb8] sm:$0xff]
    %v117 = vld [vmem:[%s2 + $0xc0] sm:$0xff]
    %v118 = vld [vmem:[%s2 + $0xc8] sm:$0xff]
    %v119 = vld [vmem:[%s2 + $0xd0] sm:$0xff]
    %v120 = vld [vmem:[%s2 + $0xd8] sm:$0xff]
    %v121 = vld [vmem:[%s2 + $0xe0] sm:$0xff]
    %v122 = vld [vmem:[%s2 + $0xe8] sm:$0xff]
    %v123 = vld [vmem:[%s2 + $0xf0] sm:$0xff]
    %v124 = vld [vmem:[%s2 + $0xf8] sm:$0xff]
    %v125 = vld [vmem:[%s2 + $0x100] sm:$0xff]
    %v126 = vld [vmem:[%s2 + $0x108] sm:$0xff]
    %v127 = vld [vmem:[%s2 + $0x110] sm:$0xff]
    %v128 = vld [vmem:[%s2 + $0x118] sm:$0xff]
    %v129 = vld [vmem:[%s2 + $0x120] sm:$0xff]
    %v130 = vld [vmem:[%s2 + $0x128] sm:$0xff]
    %v131 = vld [vmem:[%s2 + $0x130] sm:$0xff]
    %v132 = vld [vmem:[%s2 + $0x138] sm:$0xff]
    %v133 = vld [vmem:[%s2 + $0x140] sm:$0xff]
    %v134 = vld [vmem:[%s2 + $0x148] sm:$0xff]
    %v135 = vld [vmem:[%s2 + $0x150] sm:$0xff]
    %v136 = vld [vmem:[%s2 + $0x158] sm:$0xff]
    %v137 = vld [vmem:[%s2 + $0x160] sm:$0xff]
    %v138 = vld [vmem:[%s2 + $0x168] sm:$0xff]
    %v139 = vld [vmem:[%s2 + $0x170] sm:$0xff]
    %v140 = vld [vmem:[%s2 + $0x178] sm:$0xff]
    %v141 = vld [vmem:[%s2 + $0x180] sm:$0xff]
    %v142 = vld [vmem:[%s2 + $0x188] sm:$0xff]
    %v143 = vld [vmem:[%s2 + $0x190] sm:$0xff]
    %v144 = vld [vmem:[%s2 + $0x198] sm:$0xff]
    %v145 = vld [vmem:[%s2 + $0x1a0] sm:$0xff]
    %v146 = vld [vmem:[%s2 + $0x1a8] sm:$0xff]
    %v147 = vld [vmem:[%s2 + $0x1b0] sm:$0xff]
    %v148 = vld [vmem:[%s2 + $0x1b8] sm:$0xff]
    %v149 = vld [vmem:[%s2 + $0x1c0] sm:$0xff]
    %v150 = vld [vmem:[%s2 + $0x1c8] sm:$0xff]
    %v151 = vld [vmem:[%s2 + $0x1d0] sm:$0xff]
    %v152 = vld [vmem:[%s2 + $0x1d8] sm:$0xff]
    %v153 = vld [vmem:[%s2 + $0x1e0] sm:$0xff]
    %v154 = vld [vmem:[%s2 + $0x1e8] sm:$0xff]
    %v155 = vld [vmem:[%s2 + $0x1f0] sm:$0xff]
    %v156 = vld [vmem:[%s2 + $0x1f8] sm:$0xff]
    %158 = vset.pattern.permute.xlu0 0
    %159 = vperm.xlu0 %158, %v93
    %v160 = vpop.permute.xlu0 %159
    %163 = vset.pattern.permute.xlu0 0
    %164 = vperm.xlu0 %163, %v94
    %v165 = vpop.permute.xlu0 %164
    %168 = vset.pattern.permute.xlu0 0
    %169 = vperm.xlu0 %168, %v95
    %v170 = vpop.permute.xlu0 %169
    %173 = vset.pattern.permute.xlu0 0
    %174 = vperm.xlu0 %173, %v96
    %v175 = vpop.permute.xlu0 %174
    %178 = vset.pattern.permute.xlu0 0
    %179 = vperm.xlu0 %178, %v97
    %v180 = vpop.permute.xlu0 %179
    %183 = vset.pattern.permute.xlu0 0
    %184 = vperm.xlu0 %183, %v98
    %v185 = vpop.permute.xlu0 %184
    %188 = vset.pattern.permute.xlu0 0
    %189 = vperm.xlu0 %188, %v99
    %v190 = vpop.permute.xlu0 %189
    %193 = vset.pattern.permute.xlu0 0
    %194 = vperm.xlu0 %193, %v100
    %v195 = vpop.permute.xlu0 %194
    %198 = vset.pattern.permute.xlu0 0
    %199 = vperm.xlu0 %198, %v101
    %v200 = vpop.permute.xlu0 %199
    %203 = vset.pattern.permute.xlu0 0
    %204 = vperm.xlu0 %203, %v102
    %v205 = vpop.permute.xlu0 %204
    %208 = vset.pattern.permute.xlu0 0
    %209 = vperm.xlu0 %208, %v103
    %v210 = vpop.permute.xlu0 %209
    %213 = vset.pattern.permute.xlu0 0
    %214 = vperm.xlu0 %213, %v104
    %v215 = vpop.permute.xlu0 %214
    %218 = vset.pattern.permute.xlu0 0
    %219 = vperm.xlu0 %218, %v105
    %v220 = vpop.permute.xlu0 %219
    %223 = vset.pattern.permute.xlu0 0
    %224 = vperm.xlu0 %223, %v106
    %v225 = vpop.permute.xlu0 %224
    %228 = vset.pattern.permute.xlu0 0
    %229 = vperm.xlu0 %228, %v107
    %v230 = vpop.permute.xlu0 %229
    %233 = vset.pattern.permute.xlu0 0
    %234 = vperm.xlu0 %233, %v108
    %v235 = vpop.permute.xlu0 %234
    %238 = vset.pattern.permute.xlu0 0
    %239 = vperm.xlu0 %238, %v109
    %v240 = vpop.permute.xlu0 %239
    %243 = vset.pattern.permute.xlu0 0
    %244 = vperm.xlu0 %243, %v110
    %v245 = vpop.permute.xlu0 %244
    %248 = vset.pattern.permute.xlu0 0
    %249 = vperm.xlu0 %248, %v111
    %v250 = vpop.permute.xlu0 %249
    %253 = vset.pattern.permute.xlu0 0
    %254 = vperm.xlu0 %253, %v112
    %v255 = vpop.permute.xlu0 %254
    %258 = vset.pattern.permute.xlu0 0
    %259 = vperm.xlu0 %258, %v113
    %v260 = vpop.permute.xlu0 %259
    %263 = vset.pattern.permute.xlu0 0
    %264 = vperm.xlu0 %263, %v114
    %v265 = vpop.permute.xlu0 %264
    %268 = vset.pattern.permute.xlu0 0
    %269 = vperm.xlu0 %268, %v115
    %v270 = vpop.permute.xlu0 %269
    %273 = vset.pattern.permute.xlu0 0
    %274 = vperm.xlu0 %273, %v116
    %v275 = vpop.permute.xlu0 %274
    %278 = vset.pattern.permute.xlu0 0
    %279 = vperm.xlu0 %278, %v117
    %v280 = vpop.permute.xlu0 %279
    %283 = vset.pattern.permute.xlu0 0
    %284 = vperm.xlu0 %283, %v118
    %v285 = vpop.permute.xlu0 %284
    %288 = vset.pattern.permute.xlu0 0
    %289 = vperm.xlu0 %288, %v119
    %v290 = vpop.permute.xlu0 %289
    %293 = vset.pattern.permute.xlu0 0
    %294 = vperm.xlu0 %293, %v120
    %v295 = vpop.permute.xlu0 %294
    %298 = vset.pattern.permute.xlu0 0
    %299 = vperm.xlu0 %298, %v121
    %v300 = vpop.permute.xlu0 %299
    %303 = vset.pattern.permute.xlu0 0
    %304 = vperm.xlu0 %303, %v122
    %v305 = vpop.permute.xlu0 %304
    %308 = vset.pattern.permute.xlu0 0
    %309 = vperm.xlu0 %308, %v123
    %v310 = vpop.permute.xlu0 %309
    %313 = vset.pattern.permute.xlu0 0
    %314 = vperm.xlu0 %313, %v124
    %v315 = vpop.permute.xlu0 %314
    %318 = vset.pattern.permute.xlu0 0
    %319 = vperm.xlu0 %318, %v125
    %v320 = vpop.permute.xlu0 %319
    %323 = vset.pattern.permute.xlu0 0
    %324 = vperm.xlu0 %323, %v126
    %v325 = vpop.permute.xlu0 %324
    %328 = vset.pattern.permute.xlu0 0
    %329 = vperm.xlu0 %328, %v127
    %v330 = vpop.permute.xlu0 %329
    %333 = vset.pattern.permute.xlu0 0
    %334 = vperm.xlu0 %333, %v128
    %v335 = vpop.permute.xlu0 %334
    %338 = vset.pattern.permute.xlu0 0
    %339 = vperm.xlu0 %338, %v129
    %v340 = vpop.permute.xlu0 %339
    %343 = vset.pattern.permute.xlu0 0
    %344 = vperm.xlu0 %343, %v130
    %v345 = vpop.permute.xlu0 %344
    %348 = vset.pattern.permute.xlu0 0
    %349 = vperm.xlu0 %348, %v131
    %v350 = vpop.permute.xlu0 %349
    %353 = vset.pattern.permute.xlu0 0
    %354 = vperm.xlu0 %353, %v132
    %v355 = vpop.permute.xlu0 %354
    %358 = vset.pattern.permute.xlu0 0
    %359 = vperm.xlu0 %358, %v133
    %v360 = vpop.permute.xlu0 %359
    %363 = vset.pattern.permute.xlu0 0
    %364 = vperm.xlu0 %363, %v134
    %v365 = vpop.permute.xlu0 %364
    %368 = vset.pattern.permute.xlu0 0
    %369 = vperm.xlu0 %368, %v135
    %v370 = vpop.permute.xlu0 %369
    %373 = vset.pattern.permute.xlu0 0
    %374 = vperm.xlu0 %373, %v136
    %v375 = vpop.permute.xlu0 %374
    %378 = vset.pattern.permute.xlu0 0
    %379 = vperm.xlu0 %378, %v137
    %v380 = vpop.permute.xlu0 %379
    %383 = vset.pattern.permute.xlu0 0
    %384 = vperm.xlu0 %383, %v138
    %v385 = vpop.permute.xlu0 %384
    %388 = vset.pattern.permute.xlu0 0
    %389 = vperm.xlu0 %388, %v139
    %v390 = vpop.permute.xlu0 %389
    %393 = vset.pattern.permute.xlu0 0
    %394 = vperm.xlu0 %393, %v140
    %v395 = vpop.permute.xlu0 %394
    %398 = vset.pattern.permute.xlu0 0
    %399 = vperm.xlu0 %398, %v141
    %v400 = vpop.permute.xlu0 %399
    %403 = vset.pattern.permute.xlu0 0
    %404 = vperm.xlu0 %403, %v142
    %v405 = vpop.permute.xlu0 %404
    %408 = vset.pattern.permute.xlu0 0
    %409 = vperm.xlu0 %408, %v143
    %v410 = vpop.permute.xlu0 %409
    %413 = vset.pattern.permute.xlu0 0
    %414 = vperm.xlu0 %413, %v144
    %v415 = vpop.permute.xlu0 %414
    %418 = vset.pattern.permute.xlu0 0
    %419 = vperm.xlu0 %418, %v145
    %v420 = vpop.permute.xlu0 %419
    %423 = vset.pattern.permute.xlu0 0
    %424 = vperm.xlu0 %423, %v146
    %v425 = vpop.permute.xlu0 %424
    %428 = vset.pattern.permute.xlu0 0
    %429 = vperm.xlu0 %428, %v147
    %v430 = vpop.permute.xlu0 %429
    %433 = vset.pattern.permute.xlu0 0
    %434 = vperm.xlu0 %433, %v148
    %v435 = vpop.permute.xlu0 %434
    %438 = vset.pattern.permute.xlu0 0
    %439 = vperm.xlu0 %438, %v149
    %v440 = vpop.permute.xlu0 %439
    %443 = vset.pattern.permute.xlu0 0
    %444 = vperm.xlu0 %443, %v150
    %v445 = vpop.permute.xlu0 %444
    %448 = vset.pattern.permute.xlu0 0
    %449 = vperm.xlu0 %448, %v151
    %v450 = vpop.permute.xlu0 %449
    %453 = vset.pattern.permute.xlu0 0
    %454 = vperm.xlu0 %453, %v152
    %v455 = vpop.permute.xlu0 %454
    %458 = vset.pattern.permute.xlu0 0
    %459 = vperm.xlu0 %458, %v153
    %v460 = vpop.permute.xlu0 %459
    %463 = vset.pattern.permute.xlu0 0
    %464 = vperm.xlu0 %463, %v154
    %v465 = vpop.permute.xlu0 %464
    %468 = vset.pattern.permute.xlu0 0
    %469 = vperm.xlu0 %468, %v155
    %v470 = vpop.permute.xlu0 %469
    %473 = vset.pattern.permute.xlu0 0
    %474 = vperm.xlu0 %473, %v156
    %v475 = vpop.permute.xlu0 %474
    %vm477 = vcmask 64512
    %v479 = vsel %vm477, %v28, 0
    %v482 = vsel %vm477, %v29, 0
    %v485 = vsel %vm477, %v30, 0
    %v488 = vsel %vm477, %v31, 0
    %v491 = vsel %vm477, %v32, 0
    %v494 = vsel %vm477, %v33, 0
    %v497 = vsel %vm477, %v34, 0
    %v500 = vsel %vm477, %v35, 0
    %v503 = vsel %vm477, %v36, 0
    %v506 = vsel %vm477, %v37, 0
    %v509 = vsel %vm477, %v38, 0
    %v512 = vsel %vm477, %v39, 0
    %v515 = vsel %vm477, %v40, 0
    %v518 = vsel %vm477, %v41, 0
    %v521 = vsel %vm477, %v42, 0
    %v524 = vsel %vm477, %v43, 0
    %v527 = vsel %vm477, %v44, 0
    %v530 = vsel %vm477, %v45, 0
    %v533 = vsel %vm477, %v46, 0
    %v536 = vsel %vm477, %v47, 0
    %v539 = vsel %vm477, %v48, 0
    %v542 = vsel %vm477, %v49, 0
    %v545 = vsel %vm477, %v50, 0
    %v548 = vsel %vm477, %v51, 0
    %v551 = vsel %vm477, %v52, 0
    %v554 = vsel %vm477, %v53, 0
    %v557 = vsel %vm477, %v54, 0
    %v560 = vsel %vm477, %v55, 0
    %v563 = vsel %vm477, %v56, 0
    %v566 = vsel %vm477, %v57, 0
    %v569 = vsel %vm477, %v58, 0
    %v572 = vsel %vm477, %v59, 0
    %v575 = vsel %vm477, %v60, 0
    %v578 = vsel %vm477, %v61, 0
    %v581 = vsel %vm477, %v62, 0
    %v584 = vsel %vm477, %v63, 0
    %v587 = vsel %vm477, %v64, 0
    %v590 = vsel %vm477, %v65, 0
    %v593 = vsel %vm477, %v66, 0
    %v596 = vsel %vm477, %v67, 0
    %v599 = vsel %vm477, %v68, 0
    %v602 = vsel %vm477, %v69, 0
    %v605 = vsel %vm477, %v70, 0
    %v608 = vsel %vm477, %v71, 0
    %v611 = vsel %vm477, %v72, 0
    %v614 = vsel %vm477, %v73, 0
    %v617 = vsel %vm477, %v74, 0
    %v620 = vsel %vm477, %v75, 0
    %v623 = vsel %vm477, %v76, 0
    %v626 = vsel %vm477, %v77, 0
    %v629 = vsel %vm477, %v78, 0
    %v632 = vsel %vm477, %v79, 0
    %v635 = vsel %vm477, %v80, 0
    %v638 = vsel %vm477, %v81, 0
    %v641 = vsel %vm477, %v82, 0
    %v644 = vsel %vm477, %v83, 0
    %v647 = vsel %vm477, %v84, 0
    %v650 = vsel %vm477, %v85, 0
    %v653 = vsel %vm477, %v86, 0
    %v656 = vsel %vm477, %v87, 0
    %v659 = vsel %vm477, %v88, 0
    %v662 = vsel %vm477, %v89, 0
    %v665 = vsel %vm477, %v90, 0
    %v668 = vsel %vm477, %v91, 0
    %670 = vmatpush.msra.mxu0 0.0
    %671 = vmatpush.msra.mxu0 0.0
    %672 = vmatpush.msra.mxu0 0.0
    %673 = vmatpush.msra.mxu0 0.0
    %674 = vmatpush.msra.mxu0 0.0
    %675 = vmatpush.msra.mxu0 0.0
    %676 = vmatpush.msra.mxu0 0.0
    %677 = vmatpush.msra.mxu0 0.0
    %678 = vmatpush.msra.mxu0 0.0
    %679 = vmatpush.msra.mxu0 0.0
    %680 = vmatpush.msra.mxu0 0.0
    %681 = vmatpush.msra.mxu0 0.0
    %682 = vmatpush.msra.mxu0 0.0
    %683 = vmatpush.msra.mxu0 0.0
    %684 = vmatpush.msra.mxu0 0.0
    %685 = vmatpush.msra.mxu0 %v92
    %686 = vmatmul.f32.gmra.mxu0 %v479
    %v687 = vpop.f32.mrf.mxu0
    %v688 = vadd.f32 %v160, %v687
    %689 = vmatmul.f32.gmra.mxu0 %v482
    %v690 = vpop.f32.mrf.mxu0
    %v691 = vadd.f32 %v165, %v690
    %692 = vmatmul.f32.gmra.mxu0 %v485
    %v693 = vpop.f32.mrf.mxu0
    %v694 = vadd.f32 %v170, %v693
    %695 = vmatmul.f32.gmra.mxu0 %v488
    %v696 = vpop.f32.mrf.mxu0
    %v697 = vadd.f32 %v175, %v696
    %698 = vmatmul.f32.gmra.mxu0 %v491
    %v699 = vpop.f32.mrf.mxu0
    %v700 = vadd.f32 %v180, %v699
    %701 = vmatmul.f32.gmra.mxu0 %v494
    %v702 = vpop.f32.mrf.mxu0
    %v703 = vadd.f32 %v185, %v702
    %704 = vmatmul.f32.gmra.mxu0 %v497
    %v705 = vpop.f32.mrf.mxu0
    %v706 = vadd.f32 %v190, %v705
    %707 = vmatmul.f32.gmra.mxu0 %v500
    %v708 = vpop.f32.mrf.mxu0
    %v709 = vadd.f32 %v195, %v708
    %710 = vmatmul.f32.gmra.mxu0 %v503
    %v711 = vpop.f32.mrf.mxu0
    %v712 = vadd.f32 %v200, %v711
    %713 = vmatmul.f32.gmra.mxu0 %v506
    %v714 = vpop.f32.mrf.mxu0
    %v715 = vadd.f32 %v205, %v714
    %716 = vmatmul.f32.gmra.mxu0 %v509
    %v717 = vpop.f32.mrf.mxu0
    %v718 = vadd.f32 %v210, %v717
    %719 = vmatmul.f32.gmra.mxu0 %v512
    %v720 = vpop.f32.mrf.mxu0
    %v721 = vadd.f32 %v215, %v720
    %722 = vmatmul.f32.gmra.mxu0 %v515
    %v723 = vpop.f32.mrf.mxu0
    %v724 = vadd.f32 %v220, %v723
    %725 = vmatmul.f32.gmra.mxu0 %v518
    %v726 = vpop.f32.mrf.mxu0
    %v727 = vadd.f32 %v225, %v726
    %728 = vmatmul.f32.gmra.mxu0 %v521
    %v729 = vpop.f32.mrf.mxu0
    %v730 = vadd.f32 %v230, %v729
    %731 = vmatmul.f32.gmra.mxu0 %v524
    %v732 = vpop.f32.mrf.mxu0
    %v733 = vadd.f32 %v235, %v732
    %734 = vmatmul.f32.gmra.mxu0 %v527
    %v735 = vpop.f32.mrf.mxu0
    %v736 = vadd.f32 %v240, %v735
    %737 = vmatmul.f32.gmra.mxu0 %v530
    %v738 = vpop.f32.mrf.mxu0
    %v739 = vadd.f32 %v245, %v738
    %740 = vmatmul.f32.gmra.mxu0 %v533
    %v741 = vpop.f32.mrf.mxu0
    %v742 = vadd.f32 %v250, %v741
    %743 = vmatmul.f32.gmra.mxu0 %v536
    %v744 = vpop.f32.mrf.mxu0
    %v745 = vadd.f32 %v255, %v744
    %746 = vmatmul.f32.gmra.mxu0 %v539
    %v747 = vpop.f32.mrf.mxu0
    %v748 = vadd.f32 %v260, %v747
    %749 = vmatmul.f32.gmra.mxu0 %v542
    %v750 = vpop.f32.mrf.mxu0
    %v751 = vadd.f32 %v265, %v750
    %752 = vmatmul.f32.gmra.mxu0 %v545
    %v753 = vpop.f32.mrf.mxu0
    %v754 = vadd.f32 %v270, %v753
    %755 = vmatmul.f32.gmra.mxu0 %v548
    %v756 = vpop.f32.mrf.mxu0
    %v757 = vadd.f32 %v275, %v756
    %758 = vmatmul.f32.gmra.mxu0 %v551
    %v759 = vpop.f32.mrf.mxu0
    %v760 = vadd.f32 %v280, %v759
    %761 = vmatmul.f32.gmra.mxu0 %v554
    %v762 = vpop.f32.mrf.mxu0
    %v763 = vadd.f32 %v285, %v762
    %764 = vmatmul.f32.gmra.mxu0 %v557
    %v765 = vpop.f32.mrf.mxu0
    %v766 = vadd.f32 %v290, %v765
    %767 = vmatmul.f32.gmra.mxu0 %v560
    %v768 = vpop.f32.mrf.mxu0
    %v769 = vadd.f32 %v295, %v768
    %770 = vmatmul.f32.gmra.mxu0 %v563
    %v771 = vpop.f32.mrf.mxu0
    %v772 = vadd.f32 %v300, %v771
    %773 = vmatmul.f32.gmra.mxu0 %v566
    %v774 = vpop.f32.mrf.mxu0
    %v775 = vadd.f32 %v305, %v774
    %776 = vmatmul.f32.gmra.mxu0 %v569
    %v777 = vpop.f32.mrf.mxu0
    %v778 = vadd.f32 %v310, %v777
    %779 = vmatmul.f32.gmra.mxu0 %v572
    %v780 = vpop.f32.mrf.mxu0
    %v781 = vadd.f32 %v315, %v780
    %782 = vmatmul.f32.gmra.mxu0 %v575
    %v783 = vpop.f32.mrf.mxu0
    %v784 = vadd.f32 %v320, %v783
    %785 = vmatmul.f32.gmra.mxu0 %v578
    %v786 = vpop.f32.mrf.mxu0
    %v787 = vadd.f32 %v325, %v786
    %788 = vmatmul.f32.gmra.mxu0 %v581
    %v789 = vpop.f32.mrf.mxu0
    %v790 = vadd.f32 %v330, %v789
    %791 = vmatmul.f32.gmra.mxu0 %v584
    %v792 = vpop.f32.mrf.mxu0
    %v793 = vadd.f32 %v335, %v792
    %794 = vmatmul.f32.gmra.mxu0 %v587
    %v795 = vpop.f32.mrf.mxu0
    %v796 = vadd.f32 %v340, %v795
    %797 = vmatmul.f32.gmra.mxu0 %v590
    %v798 = vpop.f32.mrf.mxu0
    %v799 = vadd.f32 %v345, %v798
    %800 = vmatmul.f32.gmra.mxu0 %v593
    %v801 = vpop.f32.mrf.mxu0
    %v802 = vadd.f32 %v350, %v801
    %803 = vmatmul.f32.gmra.mxu0 %v596
    %v804 = vpop.f32.mrf.mxu0
    %v805 = vadd.f32 %v355, %v804
    %806 = vmatmul.f32.gmra.mxu0 %v599
    %v807 = vpop.f32.mrf.mxu0
    %v808 = vadd.f32 %v360, %v807
    %809 = vmatmul.f32.gmra.mxu0 %v602
    %v810 = vpop.f32.mrf.mxu0
    %v811 = vadd.f32 %v365, %v810
    %812 = vmatmul.f32.gmra.mxu0 %v605
    %v813 = vpop.f32.mrf.mxu0
    %v814 = vadd.f32 %v370, %v813
    %815 = vmatmul.f32.gmra.mxu0 %v608
    %v816 = vpop.f32.mrf.mxu0
    %v817 = vadd.f32 %v375, %v816
    %818 = vmatmul.f32.gmra.mxu0 %v611
    %v819 = vpop.f32.mrf.mxu0
    %v820 = vadd.f32 %v380, %v819
    %821 = vmatmul.f32.gmra.mxu0 %v614
    %v822 = vpop.f32.mrf.mxu0
    %v823 = vadd.f32 %v385, %v822
    %824 = vmatmul.f32.gmra.mxu0 %v617
    %v825 = vpop.f32.mrf.mxu0
    %v826 = vadd.f32 %v390, %v825
    %827 = vmatmul.f32.gmra.mxu0 %v620
    %v828 = vpop.f32.mrf.mxu0
    %v829 = vadd.f32 %v395, %v828
    %830 = vmatmul.f32.gmra.mxu0 %v623
    %v831 = vpop.f32.mrf.mxu0
    %v832 = vadd.f32 %v400, %v831
    %833 = vmatmul.f32.gmra.mxu0 %v626
    %v834 = vpop.f32.mrf.mxu0
    %v835 = vadd.f32 %v405, %v834
    %836 = vmatmul.f32.gmra.mxu0 %v629
    %v837 = vpop.f32.mrf.mxu0
    %v838 = vadd.f32 %v410, %v837
    %839 = vmatmul.f32.gmra.mxu0 %v632
    %v840 = vpop.f32.mrf.mxu0
    %v841 = vadd.f32 %v415, %v840
    %842 = vmatmul.f32.gmra.mxu0 %v635
    %v843 = vpop.f32.mrf.mxu0
    %v844 = vadd.f32 %v420, %v843
    %845 = vmatmul.f32.gmra.mxu0 %v638
    %v846 = vpop.f32.mrf.mxu0
    %v847 = vadd.f32 %v425, %v846
    %848 = vmatmul.f32.gmra.mxu0 %v641
    %v849 = vpop.f32.mrf.mxu0
    %v850 = vadd.f32 %v430, %v849
    %851 = vmatmul.f32.gmra.mxu0 %v644
    %v852 = vpop.f32.mrf.mxu0
    %v853 = vadd.f32 %v435, %v852
    %854 = vmatmul.f32.gmra.mxu0 %v647
    %v855 = vpop.f32.mrf.mxu0
    %v856 = vadd.f32 %v440, %v855
    %857 = vmatmul.f32.gmra.mxu0 %v650
    %v858 = vpop.f32.mrf.mxu0
    %v859 = vadd.f32 %v445, %v858
    %860 = vmatmul.f32.gmra.mxu0 %v653
    %v861 = vpop.f32.mrf.mxu0
    %v862 = vadd.f32 %v450, %v861
    %863 = vmatmul.f32.gmra.mxu0 %v656
    %v864 = vpop.f32.mrf.mxu0
    %v865 = vadd.f32 %v455, %v864
    %866 = vmatmul.f32.gmra.mxu0 %v659
    %v867 = vpop.f32.mrf.mxu0
    %v868 = vadd.f32 %v460, %v867
    %869 = vmatmul.f32.gmra.mxu0 %v662
    %v870 = vpop.f32.mrf.mxu0
    %v871 = vadd.f32 %v465, %v870
    %872 = vmatmul.f32.gmra.mxu0 %v665
    %v873 = vpop.f32.mrf.mxu0
    %v874 = vadd.f32 %v470, %v873
    %875 = vmatmul.f32.gmra.mxu0 %v668
    %v876 = vpop.f32.mrf.mxu0
    %v877 = vadd.f32 %v475, %v876
    %878 = vdwg.mxu0
    %v879 = vmax.f32 %v688, 0.0
    %v880 = vmax.f32 %v691, 0.0
    %v881 = vmax.f32 %v694, 0.0
    %v882 = vmax.f32 %v697, 0.0
    %v883 = vmax.f32 %v700, 0.0
    %v884 = vmax.f32 %v703, 0.0
    %v885 = vmax.f32 %v706, 0.0
    %v886 = vmax.f32 %v709, 0.0
    %v887 = vmax.f32 %v712, 0.0
    %v888 = vmax.f32 %v715, 0.0
    %v889 = vmax.f32 %v718, 0.0
    %v890 = vmax.f32 %v721, 0.0
    %v891 = vmax.f32 %v724, 0.0
    %v892 = vmax.f32 %v727, 0.0
    %v893 = vmax.f32 %v730, 0.0
    %v894 = vmax.f32 %v733, 0.0
    %v895 = vmax.f32 %v736, 0.0
    %v896 = vmax.f32 %v739, 0.0
    %v897 = vmax.f32 %v742, 0.0
    %v898 = vmax.f32 %v745, 0.0
    %v899 = vmax.f32 %v748, 0.0
    %v900 = vmax.f32 %v751, 0.0
    %v901 = vmax.f32 %v754, 0.0
    %v902 = vmax.f32 %v757, 0.0
    %v903 = vmax.f32 %v760, 0.0
    %v904 = vmax.f32 %v763, 0.0
    %v905 = vmax.f32 %v766, 0.0
    %v906 = vmax.f32 %v769, 0.0
    %v907 = vmax.f32 %v772, 0.0
    %v908 = vmax.f32 %v775, 0.0
    %v909 = vmax.f32 %v778, 0.0
    %v910 = vmax.f32 %v781, 0.0
    %v911 = vmax.f32 %v784, 0.0
    %v912 = vmax.f32 %v787, 0.0
    %v913 = vmax.f32 %v790, 0.0
    %v914 = vmax.f32 %v793, 0.0
    %v915 = vmax.f32 %v796, 0.0
    %v916 = vmax.f32 %v799, 0.0
    %v917 = vmax.f32 %v802, 0.0
    %v918 = vmax.f32 %v805, 0.0
    %v919 = vmax.f32 %v808, 0.0
    %v920 = vmax.f32 %v811, 0.0
    %v921 = vmax.f32 %v814, 0.0
    %v922 = vmax.f32 %v817, 0.0
    %v923 = vmax.f32 %v820, 0.0
    %v924 = vmax.f32 %v823, 0.0
    %v925 = vmax.f32 %v826, 0.0
    %v926 = vmax.f32 %v829, 0.0
    %v927 = vmax.f32 %v832, 0.0
    %v928 = vmax.f32 %v835, 0.0
    %v929 = vmax.f32 %v838, 0.0
    %v930 = vmax.f32 %v841, 0.0
    %v931 = vmax.f32 %v844, 0.0
    %v932 = vmax.f32 %v847, 0.0
    %v933 = vmax.f32 %v850, 0.0
    %v934 = vmax.f32 %v853, 0.0
    %v935 = vmax.f32 %v856, 0.0
    %v936 = vmax.f32 %v859, 0.0
    %v937 = vmax.f32 %v862, 0.0
    %v938 = vmax.f32 %v865, 0.0
    %v939 = vmax.f32 %v868, 0.0
    %v940 = vmax.f32 %v871, 0.0
    %v941 = vmax.f32 %v874, 0.0
    %v942 = vmax.f32 %v877, 0.0
    %v943 = vld [vmem:[%s3] sm:$0xff]
    %v944 = vld [vmem:[%s3 + $0x8] sm:$0xff]
    %v945 = vld [vmem:[%s3 + $0x10] sm:$0xff]
    %v946 = vld [vmem:[%s3 + $0x18] sm:$0xff]
    %v947 = vld [vmem:[%s3 + $0x20] sm:$0xff]
    %v948 = vld [vmem:[%s3 + $0x28] sm:$0xff]
    %v949 = vld [vmem:[%s3 + $0x30] sm:$0xff]
    %v950 = vld [vmem:[%s3 + $0x38] sm:$0xff]
    %v951 = vld [vmem:[%s3 + $0x40] sm:$0xff]
    %v952 = vld [vmem:[%s3 + $0x48] sm:$0xff]
    %v953 = vld [vmem:[%s3 + $0x50] sm:$0xff]
    %v954 = vld [vmem:[%s3 + $0x58] sm:$0xff]
    %v955 = vld [vmem:[%s3 + $0x60] sm:$0xff]
    %v956 = vld [vmem:[%s3 + $0x68] sm:$0xff]
    %v957 = vld [vmem:[%s3 + $0x70] sm:$0xff]
    %v958 = vld [vmem:[%s3 + $0x78] sm:$0xff]
    %v959 = vld [vmem:[%s3 + $0x80] sm:$0xff]
    %v960 = vld [vmem:[%s3 + $0x88] sm:$0xff]
    %v961 = vld [vmem:[%s3 + $0x90] sm:$0xff]
    %v962 = vld [vmem:[%s3 + $0x98] sm:$0xff]
    %v963 = vld [vmem:[%s3 + $0xa0] sm:$0xff]
    %v964 = vld [vmem:[%s3 + $0xa8] sm:$0xff]
    %v965 = vld [vmem:[%s3 + $0xb0] sm:$0xff]
    %v966 = vld [vmem:[%s3 + $0xb8] sm:$0xff]
    %v967 = vld [vmem:[%s3 + $0xc0] sm:$0xff]
    %v968 = vld [vmem:[%s3 + $0xc8] sm:$0xff]
    %v969 = vld [vmem:[%s3 + $0xd0] sm:$0xff]
    %v970 = vld [vmem:[%s3 + $0xd8] sm:$0xff]
    %v971 = vld [vmem:[%s3 + $0xe0] sm:$0xff]
    %v972 = vld [vmem:[%s3 + $0xe8] sm:$0xff]
    %v973 = vld [vmem:[%s3 + $0xf0] sm:$0xff]
    %v974 = vld [vmem:[%s3 + $0xf8] sm:$0xff]
    %v975 = vld [vmem:[%s3 + $0x100] sm:$0xff]
    %v976 = vld [vmem:[%s3 + $0x108] sm:$0xff]
    %v977 = vld [vmem:[%s3 + $0x110] sm:$0xff]
    %v978 = vld [vmem:[%s3 + $0x118] sm:$0xff]
    %v979 = vld [vmem:[%s3 + $0x120] sm:$0xff]
    %v980 = vld [vmem:[%s3 + $0x128] sm:$0xff]
    %v981 = vld [vmem:[%s3 + $0x130] sm:$0xff]
    %v982 = vld [vmem:[%s3 + $0x138] sm:$0xff]
    %v983 = vld [vmem:[%s3 + $0x140] sm:$0xff]
    %v984 = vld [vmem:[%s3 + $0x148] sm:$0xff]
    %v985 = vld [vmem:[%s3 + $0x150] sm:$0xff]
    %v986 = vld [vmem:[%s3 + $0x158] sm:$0xff]
    %v987 = vld [vmem:[%s3 + $0x160] sm:$0xff]
    %v988 = vld [vmem:[%s3 + $0x168] sm:$0xff]
    %v989 = vld [vmem:[%s3 + $0x170] sm:$0xff]
    %v990 = vld [vmem:[%s3 + $0x178] sm:$0xff]
    %v991 = vld [vmem:[%s3 + $0x180] sm:$0xff]
    %v992 = vld [vmem:[%s3 + $0x188] sm:$0xff]
    %v993 = vld [vmem:[%s3 + $0x190] sm:$0xff]
    %v994 = vld [vmem:[%s3 + $0x198] sm:$0xff]
    %v995 = vld [vmem:[%s3 + $0x1a0] sm:$0xff]
    %v996 = vld [vmem:[%s3 + $0x1a8] sm:$0xff]
    %v997 = vld [vmem:[%s3 + $0x1b0] sm:$0xff]
    %v998 = vld [vmem:[%s3 + $0x1b8] sm:$0xff]
    %v999 = vld [vmem:[%s3 + $0x1c0] sm:$0xff]
    %v1000 = vld [vmem:[%s3 + $0x1c8] sm:$0xff]
    %v1001 = vld [vmem:[%s3 + $0x1d0] sm:$0xff]
    %v1002 = vld [vmem:[%s3 + $0x1d8] sm:$0xff]
    %v1003 = vld [vmem:[%s3 + $0x1e0] sm:$0xff]
    %v1004 = vld [vmem:[%s3 + $0x1e8] sm:$0xff]
    %v1005 = vld [vmem:[%s3 + $0x1f0] sm:$0xff]
    %v1006 = vld [vmem:[%s3 + $0x1f8] sm:$0xff]
    %v1007 = vld [vmem:[%s3 + $0x200] sm:$0xff]
    %v1008 = vld [vmem:[%s3 + $0x208] sm:$0xff]
    %v1009 = vld [vmem:[%s3 + $0x210] sm:$0xff]
    %v1010 = vld [vmem:[%s3 + $0x218] sm:$0xff]
    %v1011 = vld [vmem:[%s3 + $0x220] sm:$0xff]
    %v1012 = vld [vmem:[%s3 + $0x228] sm:$0xff]
    %v1013 = vld [vmem:[%s3 + $0x230] sm:$0xff]
    %v1014 = vld [vmem:[%s3 + $0x238] sm:$0xff]
    %v1015 = vld [vmem:[%s3 + $0x240] sm:$0xff]
    %v1016 = vld [vmem:[%s3 + $0x248] sm:$0xff]
    %v1017 = vld [vmem:[%s3 + $0x250] sm:$0xff]
    %v1018 = vld [vmem:[%s3 + $0x258] sm:$0xff]
    %v1019 = vld [vmem:[%s3 + $0x260] sm:$0xff]
    %v1020 = vld [vmem:[%s3 + $0x268] sm:$0xff]
    %v1021 = vld [vmem:[%s3 + $0x270] sm:$0xff]
    %v1022 = vld [vmem:[%s3 + $0x278] sm:$0xff]
    %v1023 = vld [vmem:[%s3 + $0x280] sm:$0xff]
    %v1024 = vld [vmem:[%s3 + $0x288] sm:$0xff]
    %v1025 = vld [vmem:[%s3 + $0x290] sm:$0xff]
    %v1026 = vld [vmem:[%s3 + $0x298] sm:$0xff]
    %v1027 = vld [vmem:[%s3 + $0x2a0] sm:$0xff]
    %v1028 = vld [vmem:[%s3 + $0x2a8] sm:$0xff]
    %v1029 = vld [vmem:[%s3 + $0x2b0] sm:$0xff]
    %v1030 = vld [vmem:[%s3 + $0x2b8] sm:$0xff]
    %v1031 = vld [vmem:[%s3 + $0x2c0] sm:$0xff]
    %v1032 = vld [vmem:[%s3 + $0x2c8] sm:$0xff]
    %v1033 = vld [vmem:[%s3 + $0x2d0] sm:$0xff]
    %v1034 = vld [vmem:[%s3 + $0x2d8] sm:$0xff]
    %v1035 = vld [vmem:[%s3 + $0x2e0] sm:$0xff]
    %v1036 = vld [vmem:[%s3 + $0x2e8] sm:$0xff]
    %v1037 = vld [vmem:[%s3 + $0x2f0] sm:$0xff]
    %v1038 = vld [vmem:[%s3 + $0x2f8] sm:$0xff]
    %v1039 = vld [vmem:[%s3 + $0x300] sm:$0xff]
    %v1040 = vld [vmem:[%s3 + $0x308] sm:$0xff]
    %v1041 = vld [vmem:[%s3 + $0x310] sm:$0xff]
    %v1042 = vld [vmem:[%s3 + $0x318] sm:$0xff]
    %v1043 = vld [vmem:[%s3 + $0x320] sm:$0xff]
    %v1044 = vld [vmem:[%s3 + $0x328] sm:$0xff]
    %v1045 = vld [vmem:[%s3 + $0x330] sm:$0xff]
    %v1046 = vld [vmem:[%s3 + $0x338] sm:$0xff]
    %v1047 = vld [vmem:[%s3 + $0x340] sm:$0xff]
    %v1048 = vld [vmem:[%s3 + $0x348] sm:$0xff]
    %v1049 = vld [vmem:[%s3 + $0x350] sm:$0xff]
    %v1050 = vld [vmem:[%s3 + $0x358] sm:$0xff]
    %v1051 = vld [vmem:[%s3 + $0x360] sm:$0xff]
    %v1052 = vld [vmem:[%s3 + $0x368] sm:$0xff]
    %v1053 = vld [vmem:[%s3 + $0x370] sm:$0xff]
    %v1054 = vld [vmem:[%s3 + $0x378] sm:$0xff]
    %v1055 = vld [vmem:[%s3 + $0x380] sm:$0xff]
    %v1056 = vld [vmem:[%s3 + $0x388] sm:$0xff]
    %v1057 = vld [vmem:[%s3 + $0x390] sm:$0xff]
    %v1058 = vld [vmem:[%s3 + $0x398] sm:$0xff]
    %v1059 = vld [vmem:[%s3 + $0x3a0] sm:$0xff]
    %v1060 = vld [vmem:[%s3 + $0x3a8] sm:$0xff]
    %v1061 = vld [vmem:[%s3 + $0x3b0] sm:$0xff]
    %v1062 = vld [vmem:[%s3 + $0x3b8] sm:$0xff]
    %v1063 = vld [vmem:[%s3 + $0x3c0] sm:$0xff]
    %v1064 = vld [vmem:[%s3 + $0x3c8] sm:$0xff]
    %v1065 = vld [vmem:[%s3 + $0x3d0] sm:$0xff]
    %v1066 = vld [vmem:[%s3 + $0x3d8] sm:$0xff]
    %v1067 = vld [vmem:[%s3 + $0x3e0] sm:$0xff]
    %v1068 = vld [vmem:[%s3 + $0x3e8] sm:$0xff]
    %v1069 = vld [vmem:[%s3 + $0x3f0] sm:$0xff]
    %v1070 = vld [vmem:[%s3 + $0x3f8] sm:$0xff]
    %v1071 = vld [vmem:[%s4] sm:$0xff]
    %v1072 = vld [vmem:[%s4 + $0x8] sm:$0xff]
    %v1073 = vld [vmem:[%s4 + $0x10] sm:$0xff]
    %v1074 = vld [vmem:[%s4 + $0x18] sm:$0xff]
    %v1075 = vld [vmem:[%s4 + $0x20] sm:$0xff]
    %v1076 = vld [vmem:[%s4 + $0x28] sm:$0xff]
    %v1077 = vld [vmem:[%s4 + $0x30] sm:$0xff]
    %v1078 = vld [vmem:[%s4 + $0x38] sm:$0xff]
    %v1079 = vld [vmem:[%s4 + $0x40] sm:$0xff]
    %v1080 = vld [vmem:[%s4 + $0x48] sm:$0xff]
    %v1081 = vld [vmem:[%s4 + $0x50] sm:$0xff]
    %v1082 = vld [vmem:[%s4 + $0x58] sm:$0xff]
    %v1083 = vld [vmem:[%s4 + $0x60] sm:$0xff]
    %v1084 = vld [vmem:[%s4 + $0x68] sm:$0xff]
    %v1085 = vld [vmem:[%s4 + $0x70] sm:$0xff]
    %v1086 = vld [vmem:[%s4 + $0x78] sm:$0xff]
    %v1087 = vld [vmem:[%s4 + $0x80] sm:$0xff]
    %v1088 = vld [vmem:[%s4 + $0x88] sm:$0xff]
    %v1089 = vld [vmem:[%s4 + $0x90] sm:$0xff]
    %v1090 = vld [vmem:[%s4 + $0x98] sm:$0xff]
    %v1091 = vld [vmem:[%s4 + $0xa0] sm:$0xff]
    %v1092 = vld [vmem:[%s4 + $0xa8] sm:$0xff]
    %v1093 = vld [vmem:[%s4 + $0xb0] sm:$0xff]
    %v1094 = vld [vmem:[%s4 + $0xb8] sm:$0xff]
    %v1095 = vld [vmem:[%s4 + $0xc0] sm:$0xff]
    %v1096 = vld [vmem:[%s4 + $0xc8] sm:$0xff]
    %v1097 = vld [vmem:[%s4 + $0xd0] sm:$0xff]
    %v1098 = vld [vmem:[%s4 + $0xd8] sm:$0xff]
    %v1099 = vld [vmem:[%s4 + $0xe0] sm:$0xff]
    %v1100 = vld [vmem:[%s4 + $0xe8] sm:$0xff]
    %v1101 = vld [vmem:[%s4 + $0xf0] sm:$0xff]
    %v1102 = vld [vmem:[%s4 + $0xf8] sm:$0xff]
    %1104 = vset.pattern.permute.xlu0 0
    %1105 = vperm.xlu0 %1104, %v1071
    %v1106 = vpop.permute.xlu0 %1105
    %1109 = vset.pattern.permute.xlu0 0
    %1110 = vperm.xlu0 %1109, %v1072
    %v1111 = vpop.permute.xlu0 %1110
    %1114 = vset.pattern.permute.xlu0 0
    %1115 = vperm.xlu0 %1114, %v1073
    %v1116 = vpop.permute.xlu0 %1115
    %1119 = vset.pattern.permute.xlu0 0
    %1120 = vperm.xlu0 %1119, %v1074
    %v1121 = vpop.permute.xlu0 %1120
    %1124 = vset.pattern.permute.xlu0 0
    %1125 = vperm.xlu0 %1124, %v1075
    %v1126 = vpop.permute.xlu0 %1125
    %1129 = vset.pattern.permute.xlu0 0
    %1130 = vperm.xlu0 %1129, %v1076
    %v1131 = vpop.permute.xlu0 %1130
    %1134 = vset.pattern.permute.xlu0 0
    %1135 = vperm.xlu0 %1134, %v1077
    %v1136 = vpop.permute.xlu0 %1135
    %1139 = vset.pattern.permute.xlu0 0
    %1140 = vperm.xlu0 %1139, %v1078
    %v1141 = vpop.permute.xlu0 %1140
    %1144 = vset.pattern.permute.xlu0 0
    %1145 = vperm.xlu0 %1144, %v1079
    %v1146 = vpop.permute.xlu0 %1145
    %1149 = vset.pattern.permute.xlu0 0
    %1150 = vperm.xlu0 %1149, %v1080
    %v1151 = vpop.permute.xlu0 %1150
    %1154 = vset.pattern.permute.xlu0 0
    %1155 = vperm.xlu0 %1154, %v1081
    %v1156 = vpop.permute.xlu0 %1155
    %1159 = vset.pattern.permute.xlu0 0
    %1160 = vperm.xlu0 %1159, %v1082
    %v1161 = vpop.permute.xlu0 %1160
    %1164 = vset.pattern.permute.xlu0 0
    %1165 = vperm.xlu0 %1164, %v1083
    %v1166 = vpop.permute.xlu0 %1165
    %1169 = vset.pattern.permute.xlu0 0
    %1170 = vperm.xlu0 %1169, %v1084
    %v1171 = vpop.permute.xlu0 %1170
    %1174 = vset.pattern.permute.xlu0 0
    %1175 = vperm.xlu0 %1174, %v1085
    %v1176 = vpop.permute.xlu0 %1175
    %1179 = vset.pattern.permute.xlu0 0
    %1180 = vperm.xlu0 %1179, %v1086
    %v1181 = vpop.permute.xlu0 %1180
    %1184 = vset.pattern.permute.xlu0 0
    %1185 = vperm.xlu0 %1184, %v1087
    %v1186 = vpop.permute.xlu0 %1185
    %1189 = vset.pattern.permute.xlu0 0
    %1190 = vperm.xlu0 %1189, %v1088
    %v1191 = vpop.permute.xlu0 %1190
    %1194 = vset.pattern.permute.xlu0 0
    %1195 = vperm.xlu0 %1194, %v1089
    %v1196 = vpop.permute.xlu0 %1195
    %1199 = vset.pattern.permute.xlu0 0
    %1200 = vperm.xlu0 %1199, %v1090
    %v1201 = vpop.permute.xlu0 %1200
    %1204 = vset.pattern.permute.xlu0 0
    %1205 = vperm.xlu0 %1204, %v1091
    %v1206 = vpop.permute.xlu0 %1205
    %1209 = vset.pattern.permute.xlu0 0
    %1210 = vperm.xlu0 %1209, %v1092
    %v1211 = vpop.permute.xlu0 %1210
    %1214 = vset.pattern.permute.xlu0 0
    %1215 = vperm.xlu0 %1214, %v1093
    %v1216 = vpop.permute.xlu0 %1215
    %1219 = vset.pattern.permute.xlu0 0
    %1220 = vperm.xlu0 %1219, %v1094
    %v1221 = vpop.permute.xlu0 %1220
    %1224 = vset.pattern.permute.xlu0 0
    %1225 = vperm.xlu0 %1224, %v1095
    %v1226 = vpop.permute.xlu0 %1225
    %1229 = vset.pattern.permute.xlu0 0
    %1230 = vperm.xlu0 %1229, %v1096
    %v1231 = vpop.permute.xlu0 %1230
    %1234 = vset.pattern.permute.xlu0 0
    %1235 = vperm.xlu0 %1234, %v1097
    %v1236 = vpop.permute.xlu0 %1235
    %1239 = vset.pattern.permute.xlu0 0
    %1240 = vperm.xlu0 %1239, %v1098
    %v1241 = vpop.permute.xlu0 %1240
    %1244 = vset.pattern.permute.xlu0 0
    %1245 = vperm.xlu0 %1244, %v1099
    %v1246 = vpop.permute.xlu0 %1245
    %1249 = vset.pattern.permute.xlu0 0
    %1250 = vperm.xlu0 %1249, %v1100
    %v1251 = vpop.permute.xlu0 %1250
    %1254 = vset.pattern.permute.xlu0 0
    %1255 = vperm.xlu0 %1254, %v1101
    %v1256 = vpop.permute.xlu0 %1255
    %1259 = vset.pattern.permute.xlu0 0
    %1260 = vperm.xlu0 %1259, %v1102
    %v1261 = vpop.permute.xlu0 %1260
    %1263 = vmatpush.msra.mxu0 %v894
    %1264 = vmatpush.msra.mxu0 %v893
    %1265 = vmatpush.msra.mxu0 %v892
    %1266 = vmatpush.msra.mxu0 %v891
    %1267 = vmatpush.msra.mxu0 %v890
    %1268 = vmatpush.msra.mxu0 %v889
    %1269 = vmatpush.msra.mxu0 %v888
    %1270 = vmatpush.msra.mxu0 %v887
    %1271 = vmatpush.msra.mxu0 %v886
    %1272 = vmatpush.msra.mxu0 %v885
    %1273 = vmatpush.msra.mxu0 %v884
    %1274 = vmatpush.msra.mxu0 %v883
    %1275 = vmatpush.msra.mxu0 %v882
    %1276 = vmatpush.msra.mxu0 %v881
    %1277 = vmatpush.msra.mxu0 %v880
    %1278 = vmatpush.msra.mxu0 %v879
    %1279 = vmatmul.f32.gmra.mxu0 %v943
    %v1280 = vpop.f32.mrf.mxu0
    %v1281 = vadd.f32 %v1106, %v1280
    %1282 = vmatmul.f32.gmra.mxu0 %v947
    %v1283 = vpop.f32.mrf.mxu0
    %v1284 = vadd.f32 %v1111, %v1283
    %1285 = vmatmul.f32.gmra.mxu0 %v951
    %v1286 = vpop.f32.mrf.mxu0
    %v1287 = vadd.f32 %v1116, %v1286
    %1288 = vmatmul.f32.gmra.mxu0 %v955
    %v1289 = vpop.f32.mrf.mxu0
    %v1290 = vadd.f32 %v1121, %v1289
    %1291 = vmatmul.f32.gmra.mxu0 %v959
    %v1292 = vpop.f32.mrf.mxu0
    %v1293 = vadd.f32 %v1126, %v1292
    %1294 = vmatmul.f32.gmra.mxu0 %v963
    %v1295 = vpop.f32.mrf.mxu0
    %v1296 = vadd.f32 %v1131, %v1295
    %1297 = vmatmul.f32.gmra.mxu0 %v967
    %v1298 = vpop.f32.mrf.mxu0
    %v1299 = vadd.f32 %v1136, %v1298
    %1300 = vmatmul.f32.gmra.mxu0 %v971
    %v1301 = vpop.f32.mrf.mxu0
    %v1302 = vadd.f32 %v1141, %v1301
    %1303 = vmatmul.f32.gmra.mxu0 %v975
    %v1304 = vpop.f32.mrf.mxu0
    %v1305 = vadd.f32 %v1146, %v1304
    %1306 = vmatmul.f32.gmra.mxu0 %v979
    %v1307 = vpop.f32.mrf.mxu0
    %v1308 = vadd.f32 %v1151, %v1307
    %1309 = vmatmul.f32.gmra.mxu0 %v983
    %v1310 = vpop.f32.mrf.mxu0
    %v1311 = vadd.f32 %v1156, %v1310
    %1312 = vmatmul.f32.gmra.mxu0 %v987
    %v1313 = vpop.f32.mrf.mxu0
    %v1314 = vadd.f32 %v1161, %v1313
    %1315 = vmatmul.f32.gmra.mxu0 %v991
    %v1316 = vpop.f32.mrf.mxu0
    %v1317 = vadd.f32 %v1166, %v1316
    %1318 = vmatmul.f32.gmra.mxu0 %v995
    %v1319 = vpop.f32.mrf.mxu0
    %v1320 = vadd.f32 %v1171, %v1319
    %1321 = vmatmul.f32.gmra.mxu0 %v999
    %v1322 = vpop.f32.mrf.mxu0
    %v1323 = vadd.f32 %v1176, %v1322
    %1324 = vmatmul.f32.gmra.mxu0 %v1003
    %v1325 = vpop.f32.mrf.mxu0
    %v1326 = vadd.f32 %v1181, %v1325
    %1327 = vmatmul.f32.gmra.mxu0 %v1007
    %v1328 = vpop.f32.mrf.mxu0
    %v1329 = vadd.f32 %v1186, %v1328
    %1330 = vmatmul.f32.gmra.mxu0 %v1011
    %v1331 = vpop.f32.mrf.mxu0
    %v1332 = vadd.f32 %v1191, %v1331
    %1333 = vmatmul.f32.gmra.mxu0 %v1015
    %v1334 = vpop.f32.mrf.mxu0
    %v1335 = vadd.f32 %v1196, %v1334
    %1336 = vmatmul.f32.gmra.mxu0 %v1019
    %v1337 = vpop.f32.mrf.mxu0
    %v1338 = vadd.f32 %v1201, %v1337
    %1339 = vmatmul.f32.gmra.mxu0 %v1023
    %v1340 = vpop.f32.mrf.mxu0
    %v1341 = vadd.f32 %v1206, %v1340
    %1342 = vmatmul.f32.gmra.mxu0 %v1027
    %v1343 = vpop.f32.mrf.mxu0
    %v1344 = vadd.f32 %v1211, %v1343
    %1345 = vmatmul.f32.gmra.mxu0 %v1031
    %v1346 = vpop.f32.mrf.mxu0
    %v1347 = vadd.f32 %v1216, %v1346
    %1348 = vmatmul.f32.gmra.mxu0 %v1035
    %v1349 = vpop.f32.mrf.mxu0
    %v1350 = vadd.f32 %v1221, %v1349
    %1351 = vmatmul.f32.gmra.mxu0 %v1039
    %v1352 = vpop.f32.mrf.mxu0
    %v1353 = vadd.f32 %v1226, %v1352
    %1354 = vmatmul.f32.gmra.mxu0 %v1043
    %v1355 = vpop.f32.mrf.mxu0
    %v1356 = vadd.f32 %v1231, %v1355
    %1357 = vmatmul.f32.gmra.mxu0 %v1047
    %v1358 = vpop.f32.mrf.mxu0
    %v1359 = vadd.f32 %v1236, %v1358
    %1360 = vmatmul.f32.gmra.mxu0 %v1051
    %v1361 = vpop.f32.mrf.mxu0
    %v1362 = vadd.f32 %v1241, %v1361
    %1363 = vmatmul.f32.gmra.mxu0 %v1055
    %v1364 = vpop.f32.mrf.mxu0
    %v1365 = vadd.f32 %v1246, %v1364
    %1366 = vmatmul.f32.gmra.mxu0 %v1059
    %v1367 = vpop.f32.mrf.mxu0
    %v1368 = vadd.f32 %v1251, %v1367
    %1369 = vmatmul.f32.gmra.mxu0 %v1063
    %v1370 = vpop.f32.mrf.mxu0
    %v1371 = vadd.f32 %v1256, %v1370
    %1372 = vmatmul.f32.gmra.mxu0 %v1067
    %v1373 = vpop.f32.mrf.mxu0
    %v1374 = vadd.f32 %v1261, %v1373
    %1375 = vdwg.mxu0
    %1376 = vmatpush.msra.mxu0 %v910
    %1377 = vmatpush.msra.mxu0 %v909
    %1378 = vmatpush.msra.mxu0 %v908
    %1379 = vmatpush.msra.mxu0 %v907
    %1380 = vmatpush.msra.mxu0 %v906
    %1381 = vmatpush.msra.mxu0 %v905
    %1382 = vmatpush.msra.mxu0 %v904
    %1383 = vmatpush.msra.mxu0 %v903
    %1384 = vmatpush.msra.mxu0 %v902
    %1385 = vmatpush.msra.mxu0 %v901
    %1386 = vmatpush.msra.mxu0 %v900
    %1387 = vmatpush.msra.mxu0 %v899
    %1388 = vmatpush.msra.mxu0 %v898
    %1389 = vmatpush.msra.mxu0 %v897
    %1390 = vmatpush.msra.mxu0 %v896
    %1391 = vmatpush.msra.mxu0 %v895
    %1392 = vmatmul.f32.gmra.mxu0 %v944
    %v1393 = vpop.f32.mrf.mxu0
    %v1394 = vadd.f32 %v1281, %v1393
    %1395 = vmatmul.f32.gmra.mxu0 %v948
    %v1396 = vpop.f32.mrf.mxu0
    %v1397 = vadd.f32 %v1284, %v1396
    %1398 = vmatmul.f32.gmra.mxu0 %v952
    %v1399 = vpop.f32.mrf.mxu0
    %v1400 = vadd.f32 %v1287, %v1399
    %1401 = vmatmul.f32.gmra.mxu0 %v956
    %v1402 = vpop.f32.mrf.mxu0
    %v1403 = vadd.f32 %v1290, %v1402
    %1404 = vmatmul.f32.gmra.mxu0 %v960
    %v1405 = vpop.f32.mrf.mxu0
    %v1406 = vadd.f32 %v1293, %v1405
    %1407 = vmatmul.f32.gmra.mxu0 %v964
    %v1408 = vpop.f32.mrf.mxu0
    %v1409 = vadd.f32 %v1296, %v1408
    %1410 = vmatmul.f32.gmra.mxu0 %v968
    %v1411 = vpop.f32.mrf.mxu0
    %v1412 = vadd.f32 %v1299, %v1411
    %1413 = vmatmul.f32.gmra.mxu0 %v972
    %v1414 = vpop.f32.mrf.mxu0
    %v1415 = vadd.f32 %v1302, %v1414
    %1416 = vmatmul.f32.gmra.mxu0 %v976
    %v1417 = vpop.f32.mrf.mxu0
    %v1418 = vadd.f32 %v1305, %v1417
    %1419 = vmatmul.f32.gmra.mxu0 %v980
    %v1420 = vpop.f32.mrf.mxu0
    %v1421 = vadd.f32 %v1308, %v1420
    %1422 = vmatmul.f32.gmra.mxu0 %v984
    %v1423 = vpop.f32.mrf.mxu0
    %v1424 = vadd.f32 %v1311, %v1423
    %1425 = vmatmul.f32.gmra.mxu0 %v988
    %v1426 = vpop.f32.mrf.mxu0
    %v1427 = vadd.f32 %v1314, %v1426
    %1428 = vmatmul.f32.gmra.mxu0 %v992
    %v1429 = vpop.f32.mrf.mxu0
    %v1430 = vadd.f32 %v1317, %v1429
    %1431 = vmatmul.f32.gmra.mxu0 %v996
    %v1432 = vpop.f32.mrf.mxu0
    %v1433 = vadd.f32 %v1320, %v1432
    %1434 = vmatmul.f32.gmra.mxu0 %v1000
    %v1435 = vpop.f32.mrf.mxu0
    %v1436 = vadd.f32 %v1323, %v1435
    %1437 = vmatmul.f32.gmra.mxu0 %v1004
    %v1438 = vpop.f32.mrf.mxu0
    %v1439 = vadd.f32 %v1326, %v1438
    %1440 = vmatmul.f32.gmra.mxu0 %v1008
    %v1441 = vpop.f32.mrf.mxu0
    %v1442 = vadd.f32 %v1329, %v1441
    %1443 = vmatmul.f32.gmra.mxu0 %v1012
    %v1444 = vpop.f32.mrf.mxu0
    %v1445 = vadd.f32 %v1332, %v1444
    %1446 = vmatmul.f32.gmra.mxu0 %v1016
    %v1447 = vpop.f32.mrf.mxu0
    %v1448 = vadd.f32 %v1335, %v1447
    %1449 = vmatmul.f32.gmra.mxu0 %v1020
    %v1450 = vpop.f32.mrf.mxu0
    %v1451 = vadd.f32 %v1338, %v1450
    %1452 = vmatmul.f32.gmra.mxu0 %v1024
    %v1453 = vpop.f32.mrf.mxu0
    %v1454 = vadd.f32 %v1341, %v1453
    %1455 = vmatmul.f32.gmra.mxu0 %v1028
    %v1456 = vpop.f32.mrf.mxu0
    %v1457 = vadd.f32 %v1344, %v1456
    %1458 = vmatmul.f32.gmra.mxu0 %v1032
    %v1459 = vpop.f32.mrf.mxu0
    %v1460 = vadd.f32 %v1347, %v1459
    %1461 = vmatmul.f32.gmra.mxu0 %v1036
    %v1462 = vpop.f32.mrf.mxu0
    %v1463 = vadd.f32 %v1350, %v1462
    %1464 = vmatmul.f32.gmra.mxu0 %v1040
    %v1465 = vpop.f32.mrf.mxu0
    %v1466 = vadd.f32 %v1353, %v1465
    %1467 = vmatmul.f32.gmra.mxu0 %v1044
    %v1468 = vpop.f32.mrf.mxu0
    %v1469 = vadd.f32 %v1356, %v1468
    %1470 = vmatmul.f32.gmra.mxu0 %v1048
    %v1471 = vpop.f32.mrf.mxu0
    %v1472 = vadd.f32 %v1359, %v1471
    %1473 = vmatmul.f32.gmra.mxu0 %v1052
    %v1474 = vpop.f32.mrf.mxu0
    %v1475 = vadd.f32 %v1362, %v1474
    %1476 = vmatmul.f32.gmra.mxu0 %v1056
    %v1477 = vpop.f32.mrf.mxu0
    %v1478 = vadd.f32 %v1365, %v1477
    %1479 = vmatmul.f32.gmra.mxu0 %v1060
    %v1480 = vpop.f32.mrf.mxu0
    %v1481 = vadd.f32 %v1368, %v1480
    %1482 = vmatmul.f32.gmra.mxu0 %v1064
    %v1483 = vpop.f32.mrf.mxu0
    %v1484 = vadd.f32 %v1371, %v1483
    %1485 = vmatmul.f32.gmra.mxu0 %v1068
    %v1486 = vpop.f32.mrf.mxu0
    %v1487 = vadd.f32 %v1374, %v1486
    %1488 = vdwg.mxu0
    %1489 = vmatpush.msra.mxu0 %v926
    %1490 = vmatpush.msra.mxu0 %v925
    %1491 = vmatpush.msra.mxu0 %v924
    %1492 = vmatpush.msra.mxu0 %v923
    %1493 = vmatpush.msra.mxu0 %v922
    %1494 = vmatpush.msra.mxu0 %v921
    %1495 = vmatpush.msra.mxu0 %v920
    %1496 = vmatpush.msra.mxu0 %v919
    %1497 = vmatpush.msra.mxu0 %v918
    %1498 = vmatpush.msra.mxu0 %v917
    %1499 = vmatpush.msra.mxu0 %v916
    %1500 = vmatpush.msra.mxu0 %v915
    %1501 = vmatpush.msra.mxu0 %v914
    %1502 = vmatpush.msra.mxu0 %v913
    %1503 = vmatpush.msra.mxu0 %v912
    %1504 = vmatpush.msra.mxu0 %v911
    %1505 = vmatmul.f32.gmra.mxu0 %v945
    %v1506 = vpop.f32.mrf.mxu0
    %v1507 = vadd.f32 %v1394, %v1506
    %1508 = vmatmul.f32.gmra.mxu0 %v949
    %v1509 = vpop.f32.mrf.mxu0
    %v1510 = vadd.f32 %v1397, %v1509
    %1511 = vmatmul.f32.gmra.mxu0 %v953
    %v1512 = vpop.f32.mrf.mxu0
    %v1513 = vadd.f32 %v1400, %v1512
    %1514 = vmatmul.f32.gmra.mxu0 %v957
    %v1515 = vpop.f32.mrf.mxu0
    %v1516 = vadd.f32 %v1403, %v1515
    %1517 = vmatmul.f32.gmra.mxu0 %v961
    %v1518 = vpop.f32.mrf.mxu0
    %v1519 = vadd.f32 %v1406, %v1518
    %1520 = vmatmul.f32.gmra.mxu0 %v965
    %v1521 = vpop.f32.mrf.mxu0
    %v1522 = vadd.f32 %v1409, %v1521
    %1523 = vmatmul.f32.gmra.mxu0 %v969
    %v1524 = vpop.f32.mrf.mxu0
    %v1525 = vadd.f32 %v1412, %v1524
    %1526 = vmatmul.f32.gmra.mxu0 %v973
    %v1527 = vpop.f32.mrf.mxu0
    %v1528 = vadd.f32 %v1415, %v1527
    %1529 = vmatmul.f32.gmra.mxu0 %v977
    %v1530 = vpop.f32.mrf.mxu0
    %v1531 = vadd.f32 %v1418, %v1530
    %1532 = vmatmul.f32.gmra.mxu0 %v981
    %v1533 = vpop.f32.mrf.mxu0
    %v1534 = vadd.f32 %v1421, %v1533
    %1535 = vmatmul.f32.gmra.mxu0 %v985
    %v1536 = vpop.f32.mrf.mxu0
    %v1537 = vadd.f32 %v1424, %v1536
    %1538 = vmatmul.f32.gmra.mxu0 %v989
    %v1539 = vpop.f32.mrf.mxu0
    %v1540 = vadd.f32 %v1427, %v1539
    %1541 = vmatmul.f32.gmra.mxu0 %v993
    %v1542 = vpop.f32.mrf.mxu0
    %v1543 = vadd.f32 %v1430, %v1542
    %1544 = vmatmul.f32.gmra.mxu0 %v997
    %v1545 = vpop.f32.mrf.mxu0
    %v1546 = vadd.f32 %v1433, %v1545
    %1547 = vmatmul.f32.gmra.mxu0 %v1001
    %v1548 = vpop.f32.mrf.mxu0
    %v1549 = vadd.f32 %v1436, %v1548
    %1550 = vmatmul.f32.gmra.mxu0 %v1005
    %v1551 = vpop.f32.mrf.mxu0
    %v1552 = vadd.f32 %v1439, %v1551
    %1553 = vmatmul.f32.gmra.mxu0 %v1009
    %v1554 = vpop.f32.mrf.mxu0
    %v1555 = vadd.f32 %v1442, %v1554
    %1556 = vmatmul.f32.gmra.mxu0 %v1013
    %v1557 = vpop.f32.mrf.mxu0
    %v1558 = vadd.f32 %v1445, %v1557
    %1559 = vmatmul.f32.gmra.mxu0 %v1017
    %v1560 = vpop.f32.mrf.mxu0
    %v1561 = vadd.f32 %v1448, %v1560
    %1562 = vmatmul.f32.gmra.mxu0 %v1021
    %v1563 = vpop.f32.mrf.mxu0
    %v1564 = vadd.f32 %v1451, %v1563
    %1565 = vmatmul.f32.gmra.mxu0 %v1025
    %v1566 = vpop.f32.mrf.mxu0
    %v1567 = vadd.f32 %v1454, %v1566
    %1568 = vmatmul.f32.gmra.mxu0 %v1029
    %v1569 = vpop.f32.mrf.mxu0
    %v1570 = vadd.f32 %v1457, %v1569
    %1571 = vmatmul.f32.gmra.mxu0 %v1033
    %v1572 = vpop.f32.mrf.mxu0
    %v1573 = vadd.f32 %v1460, %v1572
    %1574 = vmatmul.f32.gmra.mxu0 %v1037
    %v1575 = vpop.f32.mrf.mxu0
    %v1576 = vadd.f32 %v1463, %v1575
    %1577 = vmatmul.f32.gmra.mxu0 %v1041
    %v1578 = vpop.f32.mrf.mxu0
    %v1579 = vadd.f32 %v1466, %v1578
    %1580 = vmatmul.f32.gmra.mxu0 %v1045
    %v1581 = vpop.f32.mrf.mxu0
    %v1582 = vadd.f32 %v1469, %v1581
    %1583 = vmatmul.f32.gmra.mxu0 %v1049
    %v1584 = vpop.f32.mrf.mxu0
    %v1585 = vadd.f32 %v1472, %v1584
    %1586 = vmatmul.f32.gmra.mxu0 %v1053
    %v1587 = vpop.f32.mrf.mxu0
    %v1588 = vadd.f32 %v1475, %v1587
    %1589 = vmatmul.f32.gmra.mxu0 %v1057
    %v1590 = vpop.f32.mrf.mxu0
    %v1591 = vadd.f32 %v1478, %v1590
    %1592 = vmatmul.f32.gmra.mxu0 %v1061
    %v1593 = vpop.f32.mrf.mxu0
    %v1594 = vadd.f32 %v1481, %v1593
    %1595 = vmatmul.f32.gmra.mxu0 %v1065
    %v1596 = vpop.f32.mrf.mxu0
    %v1597 = vadd.f32 %v1484, %v1596
    %1598 = vmatmul.f32.gmra.mxu0 %v1069
    %v1599 = vpop.f32.mrf.mxu0
    %v1600 = vadd.f32 %v1487, %v1599
    %1601 = vdwg.mxu0
    %1602 = vmatpush.msra.mxu0 %v942
    %1603 = vmatpush.msra.mxu0 %v941
    %1604 = vmatpush.msra.mxu0 %v940
    %1605 = vmatpush.msra.mxu0 %v939
    %1606 = vmatpush.msra.mxu0 %v938
    %1607 = vmatpush.msra.mxu0 %v937
    %1608 = vmatpush.msra.mxu0 %v936
    %1609 = vmatpush.msra.mxu0 %v935
    %1610 = vmatpush.msra.mxu0 %v934
    %1611 = vmatpush.msra.mxu0 %v933
    %1612 = vmatpush.msra.mxu0 %v932
    %1613 = vmatpush.msra.mxu0 %v931
    %1614 = vmatpush.msra.mxu0 %v930
    %1615 = vmatpush.msra.mxu0 %v929
    %1616 = vmatpush.msra.mxu0 %v928
    %1617 = vmatpush.msra.mxu0 %v927
    %1618 = vmatmul.f32.gmra.mxu0 %v946
    %v1619 = vpop.f32.mrf.mxu0
    %v1620 = vadd.f32 %v1507, %v1619
    %1621 = vmatmul.f32.gmra.mxu0 %v950
    %v1622 = vpop.f32.mrf.mxu0
    %v1623 = vadd.f32 %v1510, %v1622
    %1624 = vmatmul.f32.gmra.mxu0 %v954
    %v1625 = vpop.f32.mrf.mxu0
    %v1626 = vadd.f32 %v1513, %v1625
    %1627 = vmatmul.f32.gmra.mxu0 %v958
    %v1628 = vpop.f32.mrf.mxu0
    %v1629 = vadd.f32 %v1516, %v1628
    %1630 = vmatmul.f32.gmra.mxu0 %v962
    %v1631 = vpop.f32.mrf.mxu0
    %v1632 = vadd.f32 %v1519, %v1631
    %1633 = vmatmul.f32.gmra.mxu0 %v966
    %v1634 = vpop.f32.mrf.mxu0
    %v1635 = vadd.f32 %v1522, %v1634
    %1636 = vmatmul.f32.gmra.mxu0 %v970
    %v1637 = vpop.f32.mrf.mxu0
    %v1638 = vadd.f32 %v1525, %v1637
    %1639 = vmatmul.f32.gmra.mxu0 %v974
    %v1640 = vpop.f32.mrf.mxu0
    %v1641 = vadd.f32 %v1528, %v1640
    %1642 = vmatmul.f32.gmra.mxu0 %v978
    %v1643 = vpop.f32.mrf.mxu0
    %v1644 = vadd.f32 %v1531, %v1643
    %1645 = vmatmul.f32.gmra.mxu0 %v982
    %v1646 = vpop.f32.mrf.mxu0
    %v1647 = vadd.f32 %v1534, %v1646
    %1648 = vmatmul.f32.gmra.mxu0 %v986
    %v1649 = vpop.f32.mrf.mxu0
    %v1650 = vadd.f32 %v1537, %v1649
    %1651 = vmatmul.f32.gmra.mxu0 %v990
    %v1652 = vpop.f32.mrf.mxu0
    %v1653 = vadd.f32 %v1540, %v1652
    %1654 = vmatmul.f32.gmra.mxu0 %v994
    %v1655 = vpop.f32.mrf.mxu0
    %v1656 = vadd.f32 %v1543, %v1655
    %1657 = vmatmul.f32.gmra.mxu0 %v998
    %v1658 = vpop.f32.mrf.mxu0
    %v1659 = vadd.f32 %v1546, %v1658
    %1660 = vmatmul.f32.gmra.mxu0 %v1002
    %v1661 = vpop.f32.mrf.mxu0
    %v1662 = vadd.f32 %v1549, %v1661
    %1663 = vmatmul.f32.gmra.mxu0 %v1006
    %v1664 = vpop.f32.mrf.mxu0
    %v1665 = vadd.f32 %v1552, %v1664
    %1666 = vmatmul.f32.gmra.mxu0 %v1010
    %v1667 = vpop.f32.mrf.mxu0
    %v1668 = vadd.f32 %v1555, %v1667
    %1669 = vmatmul.f32.gmra.mxu0 %v1014
    %v1670 = vpop.f32.mrf.mxu0
    %v1671 = vadd.f32 %v1558, %v1670
    %1672 = vmatmul.f32.gmra.mxu0 %v1018
    %v1673 = vpop.f32.mrf.mxu0
    %v1674 = vadd.f32 %v1561, %v1673
    %1675 = vmatmul.f32.gmra.mxu0 %v1022
    %v1676 = vpop.f32.mrf.mxu0
    %v1677 = vadd.f32 %v1564, %v1676
    %1678 = vmatmul.f32.gmra.mxu0 %v1026
    %v1679 = vpop.f32.mrf.mxu0
    %v1680 = vadd.f32 %v1567, %v1679
    %1681 = vmatmul.f32.gmra.mxu0 %v1030
    %v1682 = vpop.f32.mrf.mxu0
    %v1683 = vadd.f32 %v1570, %v1682
    %1684 = vmatmul.f32.gmra.mxu0 %v1034
    %v1685 = vpop.f32.mrf.mxu0
    %v1686 = vadd.f32 %v1573, %v1685
    %1687 = vmatmul.f32.gmra.mxu0 %v1038
    %v1688 = vpop.f32.mrf.mxu0
    %v1689 = vadd.f32 %v1576, %v1688
    %1690 = vmatmul.f32.gmra.mxu0 %v1042
    %v1691 = vpop.f32.mrf.mxu0
    %v1692 = vadd.f32 %v1579, %v1691
    %1693 = vmatmul.f32.gmra.mxu0 %v1046
    %v1694 = vpop.f32.mrf.mxu0
    %v1695 = vadd.f32 %v1582, %v1694
    %1696 = vmatmul.f32.gmra.mxu0 %v1050
    %v1697 = vpop.f32.mrf.mxu0
    %v1698 = vadd.f32 %v1585, %v1697
    %1699 = vmatmul.f32.gmra.mxu0 %v1054
    %v1700 = vpop.f32.mrf.mxu0
    %v1701 = vadd.f32 %v1588, %v1700
    %1702 = vmatmul.f32.gmra.mxu0 %v1058
    %v1703 = vpop.f32.mrf.mxu0
    %v1704 = vadd.f32 %v1591, %v1703
    %1705 = vmatmul.f32.gmra.mxu0 %v1062
    %v1706 = vpop.f32.mrf.mxu0
    %v1707 = vadd.f32 %v1594, %v1706
    %1708 = vmatmul.f32.gmra.mxu0 %v1066
    %v1709 = vpop.f32.mrf.mxu0
    %v1710 = vadd.f32 %v1597, %v1709
    %1711 = vmatmul.f32.gmra.mxu0 %v1070
    %v1712 = vpop.f32.mrf.mxu0
    %v1713 = vadd.f32 %v1600, %v1712
    %1714 = vdwg.mxu0
    %v1715 = vmax.f32 %v1620, 0.0
    %v1716 = vmax.f32 %v1623, 0.0
    %v1717 = vmax.f32 %v1626, 0.0
    %v1718 = vmax.f32 %v1629, 0.0
    %v1719 = vmax.f32 %v1632, 0.0
    %v1720 = vmax.f32 %v1635, 0.0
    %v1721 = vmax.f32 %v1638, 0.0
    %v1722 = vmax.f32 %v1641, 0.0
    %v1723 = vmax.f32 %v1644, 0.0
    %v1724 = vmax.f32 %v1647, 0.0
    %v1725 = vmax.f32 %v1650, 0.0
    %v1726 = vmax.f32 %v1653, 0.0
    %v1727 = vmax.f32 %v1656, 0.0
    %v1728 = vmax.f32 %v1659, 0.0
    %v1729 = vmax.f32 %v1662, 0.0
    %v1730 = vmax.f32 %v1665, 0.0
    %v1731 = vmax.f32 %v1668, 0.0
    %v1732 = vmax.f32 %v1671, 0.0
    %v1733 = vmax.f32 %v1674, 0.0
    %v1734 = vmax.f32 %v1677, 0.0
    %v1735 = vmax.f32 %v1680, 0.0
    %v1736 = vmax.f32 %v1683, 0.0
    %v1737 = vmax.f32 %v1686, 0.0
    %v1738 = vmax.f32 %v1689, 0.0
    %v1739 = vmax.f32 %v1692, 0.0
    %v1740 = vmax.f32 %v1695, 0.0
    %v1741 = vmax.f32 %v1698, 0.0
    %v1742 = vmax.f32 %v1701, 0.0
    %v1743 = vmax.f32 %v1704, 0.0
    %v1744 = vmax.f32 %v1707, 0.0
    %v1745 = vmax.f32 %v1710, 0.0
    %v1746 = vmax.f32 %v1713, 0.0
    %v1747 = vld [vmem:[%s5] sm:$0xff]
    %v1748 = vld [vmem:[%s5 + $0x8] sm:$0xff]
    %v1749 = vld [vmem:[%s5 + $0x10] sm:$0xff]
    %v1750 = vld [vmem:[%s5 + $0x18] sm:$0xff]
    %v1751 = vld [vmem:[%s5 + $0x20] sm:$0xff]
    %v1752 = vld [vmem:[%s5 + $0x28] sm:$0xff]
    %v1753 = vld [vmem:[%s5 + $0x30] sm:$0xff]
    %v1754 = vld [vmem:[%s5 + $0x38] sm:$0xff]
    %v1755 = vld [vmem:[%s5 + $0x40] sm:$0xff]
    %v1756 = vld [vmem:[%s5 + $0x48] sm:$0xff]
    %v1757 = vld [vmem:[%s5 + $0x50] sm:$0xff]
    %v1758 = vld [vmem:[%s5 + $0x58] sm:$0xff]
    %v1759 = vld [vmem:[%s5 + $0x60] sm:$0xff]
    %v1760 = vld [vmem:[%s5 + $0x68] sm:$0xff]
    %v1761 = vld [vmem:[%s5 + $0x70] sm:$0xff]
    %v1762 = vld [vmem:[%s5 + $0x78] sm:$0xff]
    %v1763 = vld [vmem:[%s5 + $0x80] sm:$0xff]
    %v1764 = vld [vmem:[%s5 + $0x88] sm:$0xff]
    %v1765 = vld [vmem:[%s5 + $0x90] sm:$0xff]
    %v1766 = vld [vmem:[%s5 + $0x98] sm:$0xff]
    %v1767 = vld [vmem:[%s5 + $0xa0] sm:$0xff]
    %v1768 = vld [vmem:[%s5 + $0xa8] sm:$0xff]
    %v1769 = vld [vmem:[%s5 + $0xb0] sm:$0xff]
    %v1770 = vld [vmem:[%s5 + $0xb8] sm:$0xff]
    %v1771 = vld [vmem:[%s5 + $0xc0] sm:$0xff]
    %v1772 = vld [vmem:[%s5 + $0xc8] sm:$0xff]
    %v1773 = vld [vmem:[%s5 + $0xd0] sm:$0xff]
    %v1774 = vld [vmem:[%s5 + $0xd8] sm:$0xff]
    %v1775 = vld [vmem:[%s5 + $0xe0] sm:$0xff]
    %v1776 = vld [vmem:[%s5 + $0xe8] sm:$0xff]
    %v1777 = vld [vmem:[%s5 + $0xf0] sm:$0xff]
    %v1778 = vld [vmem:[%s5 + $0xf8] sm:$0xff]
    %1780 = vset.pattern.permute.xlu0 0
    %1781 = vperm.xlu0 %1780, %v1747
    %v1782 = vpop.permute.xlu0 %1781
    %1785 = vset.pattern.permute.xlu0 0
    %1786 = vperm.xlu0 %1785, %v1748
    %v1787 = vpop.permute.xlu0 %1786
    %1790 = vset.pattern.permute.xlu0 0
    %1791 = vperm.xlu0 %1790, %v1749
    %v1792 = vpop.permute.xlu0 %1791
    %1795 = vset.pattern.permute.xlu0 0
    %1796 = vperm.xlu0 %1795, %v1750
    %v1797 = vpop.permute.xlu0 %1796
    %1800 = vset.pattern.permute.xlu0 0
    %1801 = vperm.xlu0 %1800, %v1751
    %v1802 = vpop.permute.xlu0 %1801
    %1805 = vset.pattern.permute.xlu0 0
    %1806 = vperm.xlu0 %1805, %v1752
    %v1807 = vpop.permute.xlu0 %1806
    %1810 = vset.pattern.permute.xlu0 0
    %1811 = vperm.xlu0 %1810, %v1753
    %v1812 = vpop.permute.xlu0 %1811
    %1815 = vset.pattern.permute.xlu0 0
    %1816 = vperm.xlu0 %1815, %v1754
    %v1817 = vpop.permute.xlu0 %1816
    %1820 = vset.pattern.permute.xlu0 0
    %1821 = vperm.xlu0 %1820, %v1755
    %v1822 = vpop.permute.xlu0 %1821
    %1825 = vset.pattern.permute.xlu0 0
    %1826 = vperm.xlu0 %1825, %v1756
    %v1827 = vpop.permute.xlu0 %1826
    %1830 = vset.pattern.permute.xlu0 0
    %1831 = vperm.xlu0 %1830, %v1757
    %v1832 = vpop.permute.xlu0 %1831
    %1835 = vset.pattern.permute.xlu0 0
    %1836 = vperm.xlu0 %1835, %v1758
    %v1837 = vpop.permute.xlu0 %1836
    %1840 = vset.pattern.permute.xlu0 0
    %1841 = vperm.xlu0 %1840, %v1759
    %v1842 = vpop.permute.xlu0 %1841
    %1845 = vset.pattern.permute.xlu0 0
    %1846 = vperm.xlu0 %1845, %v1760
    %v1847 = vpop.permute.xlu0 %1846
    %1850 = vset.pattern.permute.xlu0 0
    %1851 = vperm.xlu0 %1850, %v1761
    %v1852 = vpop.permute.xlu0 %1851
    %1855 = vset.pattern.permute.xlu0 0
    %1856 = vperm.xlu0 %1855, %v1762
    %v1857 = vpop.permute.xlu0 %1856
    %1860 = vset.pattern.permute.xlu0 0
    %1861 = vperm.xlu0 %1860, %v1763
    %v1862 = vpop.permute.xlu0 %1861
    %1865 = vset.pattern.permute.xlu0 0
    %1866 = vperm.xlu0 %1865, %v1764
    %v1867 = vpop.permute.xlu0 %1866
    %1870 = vset.pattern.permute.xlu0 0
    %1871 = vperm.xlu0 %1870, %v1765
    %v1872 = vpop.permute.xlu0 %1871
    %1875 = vset.pattern.permute.xlu0 0
    %1876 = vperm.xlu0 %1875, %v1766
    %v1877 = vpop.permute.xlu0 %1876
    %1880 = vset.pattern.permute.xlu0 0
    %1881 = vperm.xlu0 %1880, %v1767
    %v1882 = vpop.permute.xlu0 %1881
    %1885 = vset.pattern.permute.xlu0 0
    %1886 = vperm.xlu0 %1885, %v1768
    %v1887 = vpop.permute.xlu0 %1886
    %1890 = vset.pattern.permute.xlu0 0
    %1891 = vperm.xlu0 %1890, %v1769
    %v1892 = vpop.permute.xlu0 %1891
    %1895 = vset.pattern.permute.xlu0 0
    %1896 = vperm.xlu0 %1895, %v1770
    %v1897 = vpop.permute.xlu0 %1896
    %1900 = vset.pattern.permute.xlu0 0
    %1901 = vperm.xlu0 %1900, %v1771
    %v1902 = vpop.permute.xlu0 %1901
    %1905 = vset.pattern.permute.xlu0 0
    %1906 = vperm.xlu0 %1905, %v1772
    %v1907 = vpop.permute.xlu0 %1906
    %1910 = vset.pattern.permute.xlu0 0
    %1911 = vperm.xlu0 %1910, %v1773
    %v1912 = vpop.permute.xlu0 %1911
    %1915 = vset.pattern.permute.xlu0 0
    %1916 = vperm.xlu0 %1915, %v1774
    %v1917 = vpop.permute.xlu0 %1916
    %1920 = vset.pattern.permute.xlu0 0
    %1921 = vperm.xlu0 %1920, %v1775
    %v1922 = vpop.permute.xlu0 %1921
    %1925 = vset.pattern.permute.xlu0 0
    %1926 = vperm.xlu0 %1925, %v1776
    %v1927 = vpop.permute.xlu0 %1926
    %1930 = vset.pattern.permute.xlu0 0
    %1931 = vperm.xlu0 %1930, %v1777
    %v1932 = vpop.permute.xlu0 %1931
    %1935 = vset.pattern.permute.xlu0 0
    %1936 = vperm.xlu0 %1935, %v1778
    %v1937 = vpop.permute.xlu0 %1936
    %v1939 = vmul.f32 %v1715, %v1782
    %v1940 = vmul.f32 %v1716, %v1787
    %v1941 = vmul.f32 %v1717, %v1792
    %v1942 = vmul.f32 %v1718, %v1797
    %v1943 = vmul.f32 %v1719, %v1802
    %v1944 = vmul.f32 %v1720, %v1807
    %v1945 = vmul.f32 %v1721, %v1812
    %v1946 = vmul.f32 %v1722, %v1817
    %v1947 = vmul.f32 %v1723, %v1822
    %v1948 = vmul.f32 %v1724, %v1827
    %v1949 = vmul.f32 %v1725, %v1832
    %v1950 = vmul.f32 %v1726, %v1837
    %v1951 = vmul.f32 %v1727, %v1842
    %v1952 = vmul.f32 %v1728, %v1847
    %v1953 = vmul.f32 %v1729, %v1852
    %v1954 = vmul.f32 %v1730, %v1857
    %v1955 = vmul.f32 %v1731, %v1862
    %v1956 = vmul.f32 %v1732, %v1867
    %v1957 = vmul.f32 %v1733, %v1872
    %v1958 = vmul.f32 %v1734, %v1877
    %v1959 = vmul.f32 %v1735, %v1882
    %v1960 = vmul.f32 %v1736, %v1887
    %v1961 = vmul.f32 %v1737, %v1892
    %v1962 = vmul.f32 %v1738, %v1897
    %v1963 = vmul.f32 %v1739, %v1902
    %v1964 = vmul.f32 %v1740, %v1907
    %v1965 = vmul.f32 %v1741, %v1912
    %v1966 = vmul.f32 %v1742, %v1917
    %v1967 = vmul.f32 %v1743, %v1922
    %v1968 = vmul.f32 %v1744, %v1927
    %v1969 = vmul.f32 %v1745, %v1932
    %v1970 = vmul.f32 %v1746, %v1937
    %v1971 = vadd.f32 %v1939, %v1940
    %v1972 = vadd.f32 %v1971, %v1941
    %v1973 = vadd.f32 %v1972, %v1942
    %v1974 = vadd.f32 %v1973, %v1943
    %v1975 = vadd.f32 %v1974, %v1944
    %v1976 = vadd.f32 %v1975, %v1945
    %v1977 = vadd.f32 %v1976, %v1946
    %v1978 = vadd.f32 %v1977, %v1947
    %v1979 = vadd.f32 %v1978, %v1948
    %v1980 = vadd.f32 %v1979, %v1949
    %v1981 = vadd.f32 %v1980, %v1950
    %v1982 = vadd.f32 %v1981, %v1951
    %v1983 = vadd.f32 %v1982, %v1952
    %v1984 = vadd.f32 %v1983, %v1953
    %v1985 = vadd.f32 %v1984, %v1954
    %v1986 = vadd.f32 %v1985, %v1955
    %v1987 = vadd.f32 %v1986, %v1956
    %v1988 = vadd.f32 %v1987, %v1957
    %v1989 = vadd.f32 %v1988, %v1958
    %v1990 = vadd.f32 %v1989, %v1959
    %v1991 = vadd.f32 %v1990, %v1960
    %v1992 = vadd.f32 %v1991, %v1961
    %v1993 = vadd.f32 %v1992, %v1962
    %v1994 = vadd.f32 %v1993, %v1963
    %v1995 = vadd.f32 %v1994, %v1964
    %v1996 = vadd.f32 %v1995, %v1965
    %v1997 = vadd.f32 %v1996, %v1966
    %v1998 = vadd.f32 %v1997, %v1967
    %v1999 = vadd.f32 %v1998, %v1968
    %v2000 = vadd.f32 %v1999, %v1969
    %v2001 = vadd.f32 %v2000, %v1970
    %v2002 = vrot.slane %v2001, 4
    %v2003 = vadd.f32 %v2001, %v2002
    %v2004 = vrot.slane %v2003, 2
    %v2005 = vadd.f32 %v2003, %v2004
    %v2006 = vrot.slane %v2005, 1
    %v2007 = vadd.f32 %v2005, %v2006
    %s2008 = sld [smem:[#allocation2]]
    %v2009 = vstv %s2008
    %v2010 = vadd.f32 %v2007, %v2009
    %2011 = vst [vmem:[#allocation3] sm:$0x1] %v2010
    // Predicated region
    $region30: #{tpu_custom_call.1} parent=1 // pred_check
      _
    $region31: #{tpu_custom_call.1} parent=1 // pred_check_branch
      %2013 = sbr.rel (0) target = $region33
    $region32: #{tpu_custom_call.1} parent=1 // pred_region
      %2015 = vsyncadd [#allocation4], 0
      %s2017 = sshll.u32 [#allocation3], 4
      %s2018 = int_to_ptr.vmem [resolvable:$true] %s2017
      %s2019 = sshll.u32 %s7, 4
      %s2020 = int_to_ptr.hbm [resolvable:$true] %s2019
      %2022 = dma.vmem_to_hbm [thread:$0]  %s2018, 16, %s2020, [#allocation4]
    $region33: #{tpu_custom_call.1} parent=1 // pred_fallthru
      _
    // Predicated region
    $region34: #{tpu_custom_call.1} parent=1 // pred_check
      _
    $region35: #{tpu_custom_call.1} parent=1 // pred_check_branch
      %2024 = sbr.rel (0) target = $region37
    $region36: #{tpu_custom_call.1} parent=1 // pred_region
      %2026 = dma.done [#allocation4], 16
    $region37: #{tpu_custom_call.1} parent=1 // pred_fallthru
      _
    %2027 = vsyncpa [#allocation4], 1

</llo_original>
